<compile_context>
chip_gen: v6e
topology: v6e:2x2x1
jax: 0.10.0
libtpu: 0.0.40
codegen_flags: <defaults>
</compile_context>

<pallas_src>
import jax
import jax.numpy as jnp
from jax import lax
from jax.experimental import pallas as pl
from jax.experimental.pallas import tpu as pltpu


def _add_conv1x1_kernel(a_ref, b_ref, w_ref, o_ref):
    # a, b : [C_in, HW]         f32  (batch-1 NCHW reshapes here for free)
    # w    : [C_in, C_out_blk]  bf16 (pre-transposed, lane-dense)
    # o    : [C_out_blk, HW]    f32
    x = (a_ref[...] + b_ref[...]).astype(w_ref.dtype)      # VPU add + bf16 cast
    # "NT" matmul: contraction (C_in) is dim 0 of both operands; f32 accumulate.
    o_ref[...] = lax.dot_general(
        w_ref[...],
        x,
        dimension_numbers=(((0,), (0,)), ((), ())),
        preferred_element_type=jnp.float32,
    ).astype(o_ref.dtype)


def prepare_conv_weight(weight):
    """Do ONCE at model-load time.

    [C_out, C_in, 1, 1] f32  ->  [C_in, C_out] bf16 (lane-dense, (16,128)-tiled).
    """
    c_out, c_in = weight.shape[0], weight.shape[1]
    return jnp.asarray(weight.reshape(c_out, c_in).T, dtype=jnp.bfloat16)


def _default_cout_block(c_out):
    """Pick the C_out block size: split across cores only on multi-TC chips."""
    try:
        kind = jax.devices()[0].device_kind.lower()
    except Exception:  # pragma: no cover - defensive
        kind = ""
    # v7x has 2 TensorCores/chip: 3 blocks of 384 (multiple of 128 lanes) lets
    # the "parallel" grid shard weight streaming + matmul across both cores.
    if ("v7" in kind or "tpu7" in kind) and c_out % 384 == 0:
        return 384
    # v5e / v6e: single TensorCore, HBM-bound -> single shot (no grid overhead).
    return c_out


def add_conv1x1(x219, x205, w_prepped, *, cout_block=None):
    """x219, x205: [1, C_in, H, W] NCHW f32.  w_prepped: [C_in, C_out] bf16.

    Returns [1, C_out, H, W] NCHW f32, matching
    PyTorch Conv2d(C_in, C_out, 1, bias=False)(x219 + x205).
    """
    n, c_in, h, w = x219.shape
    assert n == 1, "NCHW-native fast path assumes batch size 1 (as in the module)"
    c_in_w, c_out = w_prepped.shape
    assert c_in_w == c_in
    hw = h * w

    # Free, contiguous reshapes — no transposes anywhere in the wrapper.
    a = x219.reshape(c_in, hw)
    b = x205.reshape(c_in, hw)

    if cout_block is None:
        cout_block = _default_cout_block(c_out)
    assert c_out % cout_block == 0 and cout_block % 128 == 0 or cout_block == c_out
    num_blocks = c_out // cout_block

    bytes_accessed = (
        2 * c_in * hw * 4        # a, b (f32)
        + c_in * c_out * 2       # weight (bf16)
        + c_out * hw * 4         # output (f32)
    )

    out_flat = pl.pallas_call(
        _add_conv1x1_kernel,
        out_shape=jax.ShapeDtypeStruct((c_out, hw), x219.dtype),
        grid_spec=pltpu.PrefetchScalarGridSpec(
            num_scalar_prefetch=0,
            grid=(num_blocks,),
            in_specs=[
                # a, b: full extent, same block every step -> fetched once.
                pl.BlockSpec((c_in, hw), lambda i: (0, 0)),
                pl.BlockSpec((c_in, hw), lambda i: (0, 0)),
                # weight: per-block slice along C_out (lane dim, 128-multiple).
                pl.BlockSpec((c_in, cout_block), lambda i: (0, i)),
            ],
            out_specs=pl.BlockSpec((cout_block, hw), lambda i: (i, 0)),
        ),
        compiler_params=pltpu.CompilerParams(
            dimension_semantics=("parallel",),
        ),
        cost_estimate=pl.CostEstimate(
            flops=2 * c_out * c_in * hw,
            transcendentals=0,
            bytes_accessed=bytes_accessed,
        ),
    )(a, b, w_prepped)

    # Free reshape back to NCHW.
    return out_flat.reshape(n, c_out, h, w)


if __name__ == "__main__":
    key = jax.random.PRNGKey(0)
    k1, k2, k3 = jax.random.split(key, 3)

    N, C_in, H, W = 1, 192, 7, 7
    C_out = 1152

    x219 = jax.random.normal(k1, (N, C_in, H, W), dtype=jnp.float32)
    x205 = jax.random.normal(k2, (N, C_in, H, W), dtype=jnp.float32)
    # Deterministic weight init (kaiming-uniform-ish scale for a 1x1 conv).
    bound = 1.0 / (C_in ** 0.5)
    weight = jax.random.uniform(
        k3, (C_out, C_in, 1, 1), dtype=jnp.float32, minval=-bound, maxval=bound
    )

    # Load-time weight prep (cast + transpose happen once, not per call).
    w_prepped = prepare_conv_weight(weight)

    out = add_conv1x1(x219, x205, w_prepped)
    out = jax.block_until_ready(out)
    assert out.shape == (N, C_out, H, W), out.shape

    # Reference with matched quantization (bf16 operands, f32 accumulation),
    # i.e. the same numerics the MXU default-precision path uses.
    x_sum = (x219 + x205).reshape(C_in, H * W)
    ref = jnp.dot(
        w_prepped.astype(jnp.float32).T,
        x_sum.astype(jnp.bfloat16).astype(jnp.float32),
    ).reshape(N, C_out, H, W)
    err = float(jnp.max(jnp.abs(out - ref)))
    assert jnp.allclose(out, ref, atol=2e-3, rtol=2e-3), err

    print("KERNEL_OK")
</pallas_src>

<mosaic_0001>
module attributes {stable_mosaic.version = 11 : i64} {
  func.func @_add_conv1x1_kernel(%arg0: i32, %arg1: memref<192x49xf32, #tpu.memory_space<vmem>>, %arg2: memref<192x49xf32, #tpu.memory_space<vmem>>, %arg3: memref<192x1152xbf16, #tpu.memory_space<vmem>>, %arg4: memref<1152x49xf32, #tpu.memory_space<vmem>>) attributes {dimension_semantics = [#tpu.dimension_semantics<parallel>], iteration_bounds = array<i64: 1>, scalar_prefetch = 0 : i64, scratch_operands = 0 : i64, tpu.core_type = #tpu.core_type<tc>, window_params = [{pipeline_mode = #tpu.pipeline_mode<synchronous>, transform_indices = @transform_0, window_bounds = array<i64: 192, 49>}, {pipeline_mode = #tpu.pipeline_mode<synchronous>, transform_indices = @transform_1, window_bounds = array<i64: 192, 49>}, {transform_indices = @transform_2, window_bounds = array<i64: 192, 1152>}, {transform_indices = @transform_3, window_bounds = array<i64: 1152, 49>}]} {
    %c0 = arith.constant 0 : index
    %c0_0 = arith.constant 0 : index
    %0 = vector.load %arg1[%c0, %c0_0] : memref<192x49xf32, #tpu.memory_space<vmem>>, vector<192x49xf32>
    %c0_1 = arith.constant 0 : index
    %c0_2 = arith.constant 0 : index
    %1 = vector.load %arg2[%c0_1, %c0_2] : memref<192x49xf32, #tpu.memory_space<vmem>>, vector<192x49xf32>
    %2 = arith.addf %0, %1 : vector<192x49xf32>
    %3 = arith.truncf %2 : vector<192x49xf32> to vector<192x49xbf16>
    %c0_3 = arith.constant 0 : index
    %c0_4 = arith.constant 0 : index
    %4 = vector.load %arg3[%c0_3, %c0_4] : memref<192x1152xbf16, #tpu.memory_space<vmem>>, vector<192x1152xbf16>
    %cst = arith.constant dense<0.000000e+00> : vector<1152x49xf32>
    %5 = tpu.matmul %4, %3, %cst {dimension_numbers = #tpu.dot_dimension_numbers<[0], [0], [1], [1], [0, 1, 1, 1], [], []>} : vector<192x1152xbf16>, vector<192x49xbf16>, vector<1152x49xf32> -> vector<1152x49xf32>
    %c0_5 = arith.constant 0 : index
    %c0_6 = arith.constant 0 : index
    %6 = vector.load %arg4[%c0_5, %c0_6] : memref<1152x49xf32, #tpu.memory_space<vmem>>, vector<1152x49xf32>
    tpu.vector_store %arg4[%c0_5, %c0_6], %5 {strides = array<i32>} : memref<1152x49xf32, #tpu.memory_space<vmem>>, vector<1152x49xf32>,
    return
  }
  func.func @transform_0(%arg0: i32) -> (i32, i32) {
    %c0_i32 = arith.constant 0 : i32
    %c0_i32_0 = arith.constant 0 : i32
    %c0_i32_1 = arith.constant 0 : i32
    return %c0_i32, %c0_i32_0 : i32, i32
  }
  func.func @transform_1(%arg0: i32) -> (i32, i32) {
    %c0_i32 = arith.constant 0 : i32
    %c0_i32_0 = arith.constant 0 : i32
    %c0_i32_1 = arith.constant 0 : i32
    return %c0_i32, %c0_i32_0 : i32, i32
  }
  func.func @transform_2(%arg0: i32) -> (i32, i32) {
    %c0_i32 = arith.constant 0 : i32
    %c0_i32_0 = arith.constant 0 : i32
    return %c0_i32, %arg0 : i32, i32
  }
  func.func @transform_3(%arg0: i32) -> (i32, i32) {
    %c0_i32 = arith.constant 0 : i32
    %c0_i32_0 = arith.constant 0 : i32
    return %arg0, %c0_i32 : i32, i32
  }
}

</mosaic_0001>

<llo_original>
// kernel: tpu_custom_call.1
$region0: #{tpu_custom_call.1}
  #allocation0 [shape = 'u32[]', space=smem, size = 0x4, offset = 0x4, fixed_abs, tag = 'smem constant byte address 0x4 - core index']
  #allocation1 [shape = 'u32[144,128]{1,0:T(1,128)}', space=vmem, size = 0x12000, scoped, tag = 'internal scratch']
  %s0 = inlined_call_operand.vmem [shape: f32[192,49], index: 0, kind: input, shape index: {}]
  %s1 = inlined_call_operand.vmem [shape: f32[192,49], index: 1, kind: input, shape index: {}]
  %s2 = inlined_call_operand.hbm [shape: bf16[192,1152], index: 2, kind: input, shape index: {}]
  %s3 = inlined_call_operand.vmem [shape: f32[1152,49], index: 3, kind: output, shape index: {}]
  %s4 = sld [smem:[#allocation0]]
  $region26: #{tpu_custom_call.1} parent=0
    _
  %s6 = ssub.s32 1, %s4
  %s7 = scalar_select 0, %s6, %s4
  $region1: #{tpu_custom_call.1} parent=0
    #allocation2 [shape = 'u8[442368]{0}', space=vmem, size = 0x6c000, scoped, tag = 'input window, operand 2, single buffered']
    #allocation3 [shape = 's32[1]{0}', space=sflag, size = 0x4, scoped, tag = 'scoped memory for tpu_custom_call.1']
    %8 = vsyncpa [#allocation3], 0
    // Predicated region
    $region2: #{tpu_custom_call.1} parent=1 // pred_check
      _
    $region3: #{tpu_custom_call.1} parent=1 // pred_check_branch
      %10 = sbr.rel (0) target = $region5
    $region4: #{tpu_custom_call.1} parent=1 // pred_region
      _
    $region5: #{tpu_custom_call.1} parent=1 // pred_fallthru
      _
    // Predicated region
    $region6: #{tpu_custom_call.1} parent=1 // pred_check
      _
    $region7: #{tpu_custom_call.1} parent=1 // pred_check_branch
      %12 = sbr.rel (0) target = $region9
    $region8: #{tpu_custom_call.1} parent=1 // pred_region
      _
    $region9: #{tpu_custom_call.1} parent=1 // pred_fallthru
      _
    // Predicated region
    $region10: #{tpu_custom_call.1} parent=1 // pred_check
      _
    $region11: #{tpu_custom_call.1} parent=1 // pred_check_branch
      %14 = sbr.rel (0) target = $region13
    $region12: #{tpu_custom_call.1} parent=1 // pred_region
      %s16 = ssub.s32 13824, 13824
      %17 = vsyncadd [#allocation3], %s16
      %s18 = sshll.u32 [#allocation2], 4
      %s19 = int_to_ptr.vmem [resolvable:$true] %s18
      %24 = dma.hbm_to_vmem [thread:$0]  %s2, 13824, %s19, [#allocation3], 576, 576, 36
    $region13: #{tpu_custom_call.1} parent=1 // pred_fallthru
      _
    // Predicated region
    $region14: #{tpu_custom_call.1} parent=1 // pred_check
      _
    $region15: #{tpu_custom_call.1} parent=1 // pred_check_branch
      %26 = sbr.rel (0) target = $region17
    $region16: #{tpu_custom_call.1} parent=1 // pred_region
      %27 = dma.done [#allocation3], 13824
    $region17: #{tpu_custom_call.1} parent=1 // pred_fallthru
      _
    %v29 = vld [vmem:[%s0] sm:$0xff]
    %v30 = vld [vmem:[%s0 + $0x8] sm:$0xff]
    %v31 = vld [vmem:[%s0 + $0x10] sm:$0xff]
    %v32 = vld [vmem:[%s0 + $0x18] sm:$0xff]
    %v33 = vld [vmem:[%s0 + $0x20] sm:$0xff]
    %v34 = vld [vmem:[%s0 + $0x28] sm:$0xff]
    %v35 = vld [vmem:[%s0 + $0x30] sm:$0xff]
    %v36 = vld [vmem:[%s0 + $0x38] sm:$0xff]
    %v37 = vld [vmem:[%s0 + $0x40] sm:$0xff]
    %v38 = vld [vmem:[%s0 + $0x48] sm:$0xff]
    %v39 = vld [vmem:[%s0 + $0x50] sm:$0xff]
    %v40 = vld [vmem:[%s0 + $0x58] sm:$0xff]
    %v41 = vld [vmem:[%s0 + $0x60] sm:$0xff]
    %v42 = vld [vmem:[%s0 + $0x68] sm:$0xff]
    %v43 = vld [vmem:[%s0 + $0x70] sm:$0xff]
    %v44 = vld [vmem:[%s0 + $0x78] sm:$0xff]
    %v45 = vld [vmem:[%s0 + $0x80] sm:$0xff]
    %v46 = vld [vmem:[%s0 + $0x88] sm:$0xff]
    %v47 = vld [vmem:[%s0 + $0x90] sm:$0xff]
    %v48 = vld [vmem:[%s0 + $0x98] sm:$0xff]
    %v49 = vld [vmem:[%s0 + $0xa0] sm:$0xff]
    %v50 = vld [vmem:[%s0 + $0xa8] sm:$0xff]
    %v51 = vld [vmem:[%s0 + $0xb0] sm:$0xff]
    %v52 = vld [vmem:[%s0 + $0xb8] sm:$0xff]
    %v53 = vld [vmem:[%s1] sm:$0xff]
    %v54 = vld [vmem:[%s1 + $0x8] sm:$0xff]
    %v55 = vld [vmem:[%s1 + $0x10] sm:$0xff]
    %v56 = vld [vmem:[%s1 + $0x18] sm:$0xff]
    %v57 = vld [vmem:[%s1 + $0x20] sm:$0xff]
    %v58 = vld [vmem:[%s1 + $0x28] sm:$0xff]
    %v59 = vld [vmem:[%s1 + $0x30] sm:$0xff]
    %v60 = vld [vmem:[%s1 + $0x38] sm:$0xff]
    %v61 = vld [vmem:[%s1 + $0x40] sm:$0xff]
    %v62 = vld [vmem:[%s1 + $0x48] sm:$0xff]
    %v63 = vld [vmem:[%s1 + $0x50] sm:$0xff]
    %v64 = vld [vmem:[%s1 + $0x58] sm:$0xff]
    %v65 = vld [vmem:[%s1 + $0x60] sm:$0xff]
    %v66 = vld [vmem:[%s1 + $0x68] sm:$0xff]
    %v67 = vld [vmem:[%s1 + $0x70] sm:$0xff]
    %v68 = vld [vmem:[%s1 + $0x78] sm:$0xff]
    %v69 = vld [vmem:[%s1 + $0x80] sm:$0xff]
    %v70 = vld [vmem:[%s1 + $0x88] sm:$0xff]
    %v71 = vld [vmem:[%s1 + $0x90] sm:$0xff]
    %v72 = vld [vmem:[%s1 + $0x98] sm:$0xff]
    %v73 = vld [vmem:[%s1 + $0xa0] sm:$0xff]
    %v74 = vld [vmem:[%s1 + $0xa8] sm:$0xff]
    %v75 = vld [vmem:[%s1 + $0xb0] sm:$0xff]
    %v76 = vld [vmem:[%s1 + $0xb8] sm:$0xff]
    %v77 = vadd.f32 %v29, %v53
    %v78 = vadd.f32 %v30, %v54
    %v79 = vadd.f32 %v31, %v55
    %v80 = vadd.f32 %v32, %v56
    %v81 = vadd.f32 %v33, %v57
    %v82 = vadd.f32 %v34, %v58
    %v83 = vadd.f32 %v35, %v59
    %v84 = vadd.f32 %v36, %v60
    %v85 = vadd.f32 %v37, %v61
    %v86 = vadd.f32 %v38, %v62
    %v87 = vadd.f32 %v39, %v63
    %v88 = vadd.f32 %v40, %v64
    %v89 = vadd.f32 %v41, %v65
    %v90 = vadd.f32 %v42, %v66
    %v91 = vadd.f32 %v43, %v67
    %v92 = vadd.f32 %v44, %v68
    %v93 = vadd.f32 %v45, %v69
    %v94 = vadd.f32 %v46, %v70
    %v95 = vadd.f32 %v47, %v71
    %v96 = vadd.f32 %v48, %v72
    %v97 = vadd.f32 %v49, %v73
    %v98 = vadd.f32 %v50, %v74
    %v99 = vadd.f32 %v51, %v75
    %v100 = vadd.f32 %v52, %v76
    %v101 = vpack.c.bf16 %v78, %v77
    %v102 = vpack.c.bf16 %v80, %v79
    %v103 = vpack.c.bf16 %v82, %v81
    %v104 = vpack.c.bf16 %v84, %v83
    %v105 = vpack.c.bf16 %v86, %v85
    %v106 = vpack.c.bf16 %v88, %v87
    %v107 = vpack.c.bf16 %v90, %v89
    %v108 = vpack.c.bf16 %v92, %v91
    %v109 = vpack.c.bf16 %v94, %v93
    %v110 = vpack.c.bf16 %v96, %v95
    %v111 = vpack.c.bf16 %v98, %v97
    %v112 = vpack.c.bf16 %v100, %v99
    %v113 = vld [vmem:[#allocation2] sm:$0xff]
    %v114 = vld [vmem:[#allocation2 + $0x8] sm:$0xff]
    %v115 = vld [vmem:[#allocation2 + $0x10] sm:$0xff]
    %v116 = vld [vmem:[#allocation2 + $0x18] sm:$0xff]
    %v117 = vld [vmem:[#allocation2 + $0x20] sm:$0xf]
    %v118 = vld [vmem:[#allocation2 + $0x24] sm:$0xff]
    %v119 = vld [vmem:[#allocation2 + $0x2c] sm:$0xff]
    %v120 = vld [vmem:[#allocation2 + $0x34] sm:$0xff]
    %v121 = vld [vmem:[#allocation2 + $0x3c] sm:$0xff]
    %v122 = vld [vmem:[#allocation2 + $0x44] sm:$0xf]
    %v123 = vld [vmem:[#allocation2 + $0x48] sm:$0xff]
    %v124 = vld [vmem:[#allocation2 + $0x50] sm:$0xff]
    %v125 = vld [vmem:[#allocation2 + $0x58] sm:$0xff]
    %v126 = vld [vmem:[#allocation2 + $0x60] sm:$0xff]
    %v127 = vld [vmem:[#allocation2 + $0x68] sm:$0xf]
    %v128 = vld [vmem:[#allocation2 + $0x6c] sm:$0xff]
    %v129 = vld [vmem:[#allocation2 + $0x74] sm:$0xff]
    %v130 = vld [vmem:[#allocation2 + $0x7c] sm:$0xff]
    %v131 = vld [vmem:[#allocation2 + $0x84] sm:$0xff]
    %v132 = vld [vmem:[#allocation2 + $0x8c] sm:$0xf]
    %v133 = vld [vmem:[#allocation2 + $0x90] sm:$0xff]
    %v134 = vld [vmem:[#allocation2 + $0x98] sm:$0xff]
    %v135 = vld [vmem:[#allocation2 + $0xa0] sm:$0xff]
    %v136 = vld [vmem:[#allocation2 + $0xa8] sm:$0xff]
    %v137 = vld [vmem:[#allocation2 + $0xb0] sm:$0xf]
    %v138 = vld [vmem:[#allocation2 + $0xb4] sm:$0xff]
    %v139 = vld [vmem:[#allocation2 + $0xbc] sm:$0xff]
    %v140 = vld [vmem:[#allocation2 + $0xc4] sm:$0xff]
    %v141 = vld [vmem:[#allocation2 + $0xcc] sm:$0xff]
    %v142 = vld [vmem:[#allocation2 + $0xd4] sm:$0xf]
    %v143 = vld [vmem:[#allocation2 + $0xd8] sm:$0xff]
    %v144 = vld [vmem:[#allocation2 + $0xe0] sm:$0xff]
    %v145 = vld [vmem:[#allocation2 + $0xe8] sm:$0xff]
    %v146 = vld [vmem:[#allocation2 + $0xf0] sm:$0xff]
    %v147 = vld [vmem:[#allocation2 + $0xf8] sm:$0xf]
    %v148 = vld [vmem:[#allocation2 + $0xfc] sm:$0xff]
    %v149 = vld [vmem:[#allocation2 + $0x104] sm:$0xff]
    %v150 = vld [vmem:[#allocation2 + $0x10c] sm:$0xff]
    %v151 = vld [vmem:[#allocation2 + $0x114] sm:$0xff]
    %v152 = vld [vmem:[#allocation2 + $0x11c] sm:$0xf]
    %v153 = vld [vmem:[#allocation2 + $0x120] sm:$0xff]
    %v154 = vld [vmem:[#allocation2 + $0x128] sm:$0xff]
    %v155 = vld [vmem:[#allocation2 + $0x130] sm:$0xff]
    %v156 = vld [vmem:[#allocation2 + $0x138] sm:$0xff]
    %v157 = vld [vmem:[#allocation2 + $0x140] sm:$0xf]
    %v158 = vld [vmem:[#allocation2 + $0x144] sm:$0xff]
    %v159 = vld [vmem:[#allocation2 + $0x14c] sm:$0xff]
    %v160 = vld [vmem:[#allocation2 + $0x154] sm:$0xff]
    %v161 = vld [vmem:[#allocation2 + $0x15c] sm:$0xff]
    %v162 = vld [vmem:[#allocation2 + $0x164] sm:$0xf]
    %v163 = vld [vmem:[#allocation2 + $0x168] sm:$0xff]
    %v164 = vld [vmem:[#allocation2 + $0x170] sm:$0xff]
    %v165 = vld [vmem:[#allocation2 + $0x178] sm:$0xff]
    %v166 = vld [vmem:[#allocation2 + $0x180] sm:$0xff]
    %v167 = vld [vmem:[#allocation2 + $0x188] sm:$0xf]
    %v168 = vld [vmem:[#allocation2 + $0x18c] sm:$0xff]
    %v169 = vld [vmem:[#allocation2 + $0x194] sm:$0xff]
    %v170 = vld [vmem:[#allocation2 + $0x19c] sm:$0xff]
    %v171 = vld [vmem:[#allocation2 + $0x1a4] sm:$0xff]
    %v172 = vld [vmem:[#allocation2 + $0x1ac] sm:$0xf]
    %v173 = vld [vmem:[#allocation2 + $0x1b0] sm:$0xff]
    %v174 = vld [vmem:[#allocation2 + $0x1b8] sm:$0xff]
    %v175 = vld [vmem:[#allocation2 + $0x1c0] sm:$0xff]
    %v176 = vld [vmem:[#allocation2 + $0x1c8] sm:$0xff]
    %v177 = vld [vmem:[#allocation2 + $0x1d0] sm:$0xf]
    %v178 = vld [vmem:[#allocation2 + $0x1d4] sm:$0xff]
    %v179 = vld [vmem:[#allocation2 + $0x1dc] sm:$0xff]
    %v180 = vld [vmem:[#allocation2 + $0x1e4] sm:$0xff]
    %v181 = vld [vmem:[#allocation2 + $0x1ec] sm:$0xff]
    %v182 = vld [vmem:[#allocation2 + $0x1f4] sm:$0xf]
    %v183 = vld [vmem:[#allocation2 + $0x1f8] sm:$0xff]
    %v184 = vld [vmem:[#allocation2 + $0x200] sm:$0xff]
    %v185 = vld [vmem:[#allocation2 + $0x208] sm:$0xff]
    %v186 = vld [vmem:[#allocation2 + $0x210] sm:$0xff]
    %v187 = vld [vmem:[#allocation2 + $0x218] sm:$0xf]
    %v188 = vld [vmem:[#allocation2 + $0x21c] sm:$0xff]
    %v189 = vld [vmem:[#allocation2 + $0x224] sm:$0xff]
    %v190 = vld [vmem:[#allocation2 + $0x22c] sm:$0xff]
    %v191 = vld [vmem:[#allocation2 + $0x234] sm:$0xff]
    %v192 = vld [vmem:[#allocation2 + $0x23c] sm:$0xf]
    %v193 = vld [vmem:[#allocation2 + $0x240] sm:$0xff]
    %v194 = vld [vmem:[#allocation2 + $0x248] sm:$0xff]
    %v195 = vld [vmem:[#allocation2 + $0x250] sm:$0xff]
    %v196 = vld [vmem:[#allocation2 + $0x258] sm:$0xff]
    %v197 = vld [vmem:[#allocation2 + $0x260] sm:$0xf]
    %v198 = vld [vmem:[#allocation2 + $0x264] sm:$0xff]
    %v199 = vld [vmem:[#allocation2 + $0x26c] sm:$0xff]
    %v200 = vld [vmem:[#allocation2 + $0x274] sm:$0xff]
    %v201 = vld [vmem:[#allocation2 + $0x27c] sm:$0xff]
    %v202 = vld [vmem:[#allocation2 + $0x284] sm:$0xf]
    %v203 = vld [vmem:[#allocation2 + $0x288] sm:$0xff]
    %v204 = vld [vmem:[#allocation2 + $0x290] sm:$0xff]
    %v205 = vld [vmem:[#allocation2 + $0x298] sm:$0xff]
    %v206 = vld [vmem:[#allocation2 + $0x2a0] sm:$0xff]
    %v207 = vld [vmem:[#allocation2 + $0x2a8] sm:$0xf]
    %v208 = vld [vmem:[#allocation2 + $0x2ac] sm:$0xff]
    %v209 = vld [vmem:[#allocation2 + $0x2b4] sm:$0xff]
    %v210 = vld [vmem:[#allocation2 + $0x2bc] sm:$0xff]
    %v211 = vld [vmem:[#allocation2 + $0x2c4] sm:$0xff]
    %v212 = vld [vmem:[#allocation2 + $0x2cc] sm:$0xf]
    %v213 = vld [vmem:[#allocation2 + $0x2d0] sm:$0xff]
    %v214 = vld [vmem:[#allocation2 + $0x2d8] sm:$0xff]
    %v215 = vld [vmem:[#allocation2 + $0x2e0] sm:$0xff]
    %v216 = vld [vmem:[#allocation2 + $0x2e8] sm:$0xff]
    %v217 = vld [vmem:[#allocation2 + $0x2f0] sm:$0xf]
    %v218 = vld [vmem:[#allocation2 + $0x2f4] sm:$0xff]
    %v219 = vld [vmem:[#allocation2 + $0x2fc] sm:$0xff]
    %v220 = vld [vmem:[#allocation2 + $0x304] sm:$0xff]
    %v221 = vld [vmem:[#allocation2 + $0x30c] sm:$0xff]
    %v222 = vld [vmem:[#allocation2 + $0x314] sm:$0xf]
    %v223 = vld [vmem:[#allocation2 + $0x318] sm:$0xff]
    %v224 = vld [vmem:[#allocation2 + $0x320] sm:$0xff]
    %v225 = vld [vmem:[#allocation2 + $0x328] sm:$0xff]
    %v226 = vld [vmem:[#allocation2 + $0x330] sm:$0xff]
    %v227 = vld [vmem:[#allocation2 + $0x338] sm:$0xf]
    %v228 = vld [vmem:[#allocation2 + $0x33c] sm:$0xff]
    %v229 = vld [vmem:[#allocation2 + $0x344] sm:$0xff]
    %v230 = vld [vmem:[#allocation2 + $0x34c] sm:$0xff]
    %v231 = vld [vmem:[#allocation2 + $0x354] sm:$0xff]
    %v232 = vld [vmem:[#allocation2 + $0x35c] sm:$0xf]
    %v353 = vunpack.c.l.b16 %v113
    %v354 = vunpack.c.h.b16 %v113
    %v355 = vunpack.c.l.b16 %v114
    %v356 = vunpack.c.h.b16 %v114
    %v357 = vunpack.c.l.b16 %v115
    %v358 = vunpack.c.h.b16 %v115
    %v359 = vunpack.c.l.b16 %v116
    %v360 = vunpack.c.h.b16 %v116
    %v361 = vunpack.c.l.b16 %v117
    %v362 = vunpack.c.l.b16 %v118
    %v363 = vunpack.c.h.b16 %v118
    %v364 = vunpack.c.l.b16 %v119
    %v365 = vunpack.c.h.b16 %v119
    %v366 = vunpack.c.l.b16 %v120
    %v367 = vunpack.c.h.b16 %v120
    %v368 = vunpack.c.l.b16 %v121
    %v369 = vunpack.c.h.b16 %v121
    %v370 = vunpack.c.l.b16 %v122
    %v371 = vunpack.c.l.b16 %v123
    %v372 = vunpack.c.h.b16 %v123
    %v373 = vunpack.c.l.b16 %v124
    %v374 = vunpack.c.h.b16 %v124
    %v375 = vunpack.c.l.b16 %v125
    %v376 = vunpack.c.h.b16 %v125
    %v377 = vunpack.c.l.b16 %v126
    %v378 = vunpack.c.h.b16 %v126
    %v379 = vunpack.c.l.b16 %v127
    %v380 = vunpack.c.l.b16 %v128
    %v381 = vunpack.c.h.b16 %v128
    %v382 = vunpack.c.l.b16 %v129
    %v383 = vunpack.c.h.b16 %v129
    %v384 = vunpack.c.l.b16 %v130
    %v385 = vunpack.c.h.b16 %v130
    %v386 = vunpack.c.l.b16 %v131
    %v387 = vunpack.c.h.b16 %v131
    %v388 = vunpack.c.l.b16 %v132
    %v389 = vunpack.c.l.b16 %v133
    %v390 = vunpack.c.h.b16 %v133
    %v391 = vunpack.c.l.b16 %v134
    %v392 = vunpack.c.h.b16 %v134
    %v393 = vunpack.c.l.b16 %v135
    %v394 = vunpack.c.h.b16 %v135
    %v395 = vunpack.c.l.b16 %v136
    %v396 = vunpack.c.h.b16 %v136
    %v397 = vunpack.c.l.b16 %v137
    %v398 = vunpack.c.l.b16 %v138
    %v399 = vunpack.c.h.b16 %v138
    %v400 = vunpack.c.l.b16 %v139
    %v401 = vunpack.c.h.b16 %v139
    %v402 = vunpack.c.l.b16 %v140
    %v403 = vunpack.c.h.b16 %v140
    %v404 = vunpack.c.l.b16 %v141
    %v405 = vunpack.c.h.b16 %v141
    %v406 = vunpack.c.l.b16 %v142
    %v407 = vunpack.c.l.b16 %v143
    %v408 = vunpack.c.h.b16 %v143
    %v409 = vunpack.c.l.b16 %v144
    %v410 = vunpack.c.h.b16 %v144
    %v411 = vunpack.c.l.b16 %v145
    %v412 = vunpack.c.h.b16 %v145
    %v413 = vunpack.c.l.b16 %v146
    %v414 = vunpack.c.h.b16 %v146
    %v415 = vunpack.c.l.b16 %v147
    %v416 = vunpack.c.l.b16 %v148
    %v417 = vunpack.c.h.b16 %v148
    %v418 = vunpack.c.l.b16 %v149
    %v419 = vunpack.c.h.b16 %v149
    %v420 = vunpack.c.l.b16 %v150
    %v421 = vunpack.c.h.b16 %v150
    %v422 = vunpack.c.l.b16 %v151
    %v423 = vunpack.c.h.b16 %v151
    %v424 = vunpack.c.l.b16 %v152
    %v425 = vunpack.c.l.b16 %v153
    %v426 = vunpack.c.h.b16 %v153
    %v427 = vunpack.c.l.b16 %v154
    %v428 = vunpack.c.h.b16 %v154
    %v429 = vunpack.c.l.b16 %v155
    %v430 = vunpack.c.h.b16 %v155
    %v431 = vunpack.c.l.b16 %v156
    %v432 = vunpack.c.h.b16 %v156
    %v433 = vunpack.c.l.b16 %v157
    %v434 = vunpack.c.l.b16 %v158
    %v435 = vunpack.c.h.b16 %v158
    %v436 = vunpack.c.l.b16 %v159
    %v437 = vunpack.c.h.b16 %v159
    %v438 = vunpack.c.l.b16 %v160
    %v439 = vunpack.c.h.b16 %v160
    %v440 = vunpack.c.l.b16 %v161
    %v441 = vunpack.c.h.b16 %v161
    %v442 = vunpack.c.l.b16 %v162
    %v443 = vunpack.c.l.b16 %v163
    %v444 = vunpack.c.h.b16 %v163
    %v445 = vunpack.c.l.b16 %v164
    %v446 = vunpack.c.h.b16 %v164
    %v447 = vunpack.c.l.b16 %v165
    %v448 = vunpack.c.h.b16 %v165
    %v449 = vunpack.c.l.b16 %v166
    %v450 = vunpack.c.h.b16 %v166
    %v451 = vunpack.c.l.b16 %v167
    %v452 = vunpack.c.l.b16 %v168
    %v453 = vunpack.c.h.b16 %v168
    %v454 = vunpack.c.l.b16 %v169
    %v455 = vunpack.c.h.b16 %v169
    %v456 = vunpack.c.l.b16 %v170
    %v457 = vunpack.c.h.b16 %v170
    %v458 = vunpack.c.l.b16 %v171
    %v459 = vunpack.c.h.b16 %v171
    %v460 = vunpack.c.l.b16 %v172
    %v461 = vunpack.c.l.b16 %v173
    %v462 = vunpack.c.h.b16 %v173
    %v463 = vunpack.c.l.b16 %v174
    %v464 = vunpack.c.h.b16 %v174
    %v465 = vunpack.c.l.b16 %v175
    %v466 = vunpack.c.h.b16 %v175
    %v467 = vunpack.c.l.b16 %v176
    %v468 = vunpack.c.h.b16 %v176
    %v469 = vunpack.c.l.b16 %v177
    %v470 = vunpack.c.l.b16 %v178
    %v471 = vunpack.c.h.b16 %v178
    %v472 = vunpack.c.l.b16 %v179
    %v473 = vunpack.c.h.b16 %v179
    %v474 = vunpack.c.l.b16 %v180
    %v475 = vunpack.c.h.b16 %v180
    %v476 = vunpack.c.l.b16 %v181
    %v477 = vunpack.c.h.b16 %v181
    %v478 = vunpack.c.l.b16 %v182
    %v479 = vunpack.c.l.b16 %v183
    %v480 = vunpack.c.h.b16 %v183
    %v481 = vunpack.c.l.b16 %v184
    %v482 = vunpack.c.h.b16 %v184
    %v483 = vunpack.c.l.b16 %v185
    %v484 = vunpack.c.h.b16 %v185
    %v485 = vunpack.c.l.b16 %v186
    %v486 = vunpack.c.h.b16 %v186
    %v487 = vunpack.c.l.b16 %v187
    %v488 = vunpack.c.l.b16 %v188
    %v489 = vunpack.c.h.b16 %v188
    %v490 = vunpack.c.l.b16 %v189
    %v491 = vunpack.c.h.b16 %v189
    %v492 = vunpack.c.l.b16 %v190
    %v493 = vunpack.c.h.b16 %v190
    %v494 = vunpack.c.l.b16 %v191
    %v495 = vunpack.c.h.b16 %v191
    %v496 = vunpack.c.l.b16 %v192
    %v497 = vunpack.c.l.b16 %v193
    %v498 = vunpack.c.h.b16 %v193
    %v499 = vunpack.c.l.b16 %v194
    %v500 = vunpack.c.h.b16 %v194
    %v501 = vunpack.c.l.b16 %v195
    %v502 = vunpack.c.h.b16 %v195
    %v503 = vunpack.c.l.b16 %v196
    %v504 = vunpack.c.h.b16 %v196
    %v505 = vunpack.c.l.b16 %v197
    %v506 = vunpack.c.l.b16 %v198
    %v507 = vunpack.c.h.b16 %v198
    %v508 = vunpack.c.l.b16 %v199
    %v509 = vunpack.c.h.b16 %v199
    %v510 = vunpack.c.l.b16 %v200
    %v511 = vunpack.c.h.b16 %v200
    %v512 = vunpack.c.l.b16 %v201
    %v513 = vunpack.c.h.b16 %v201
    %v514 = vunpack.c.l.b16 %v202
    %v515 = vunpack.c.l.b16 %v203
    %v516 = vunpack.c.h.b16 %v203
    %v517 = vunpack.c.l.b16 %v204
    %v518 = vunpack.c.h.b16 %v204
    %v519 = vunpack.c.l.b16 %v205
    %v520 = vunpack.c.h.b16 %v205
    %v521 = vunpack.c.l.b16 %v206
    %v522 = vunpack.c.h.b16 %v206
    %v523 = vunpack.c.l.b16 %v207
    %v524 = vunpack.c.l.b16 %v208
    %v525 = vunpack.c.h.b16 %v208
    %v526 = vunpack.c.l.b16 %v209
    %v527 = vunpack.c.h.b16 %v209
    %v528 = vunpack.c.l.b16 %v210
    %v529 = vunpack.c.h.b16 %v210
    %v530 = vunpack.c.l.b16 %v211
    %v531 = vunpack.c.h.b16 %v211
    %v532 = vunpack.c.l.b16 %v212
    %v533 = vunpack.c.l.b16 %v213
    %v534 = vunpack.c.h.b16 %v213
    %v535 = vunpack.c.l.b16 %v214
    %v536 = vunpack.c.h.b16 %v214
    %v537 = vunpack.c.l.b16 %v215
    %v538 = vunpack.c.h.b16 %v215
    %v539 = vunpack.c.l.b16 %v216
    %v540 = vunpack.c.h.b16 %v216
    %v541 = vunpack.c.l.b16 %v217
    %v542 = vunpack.c.l.b16 %v218
    %v543 = vunpack.c.h.b16 %v218
    %v544 = vunpack.c.l.b16 %v219
    %v545 = vunpack.c.h.b16 %v219
    %v546 = vunpack.c.l.b16 %v220
    %v547 = vunpack.c.h.b16 %v220
    %v548 = vunpack.c.l.b16 %v221
    %v549 = vunpack.c.h.b16 %v221
    %v550 = vunpack.c.l.b16 %v222
    %v551 = vunpack.c.l.b16 %v223
    %v552 = vunpack.c.h.b16 %v223
    %v553 = vunpack.c.l.b16 %v224
    %v554 = vunpack.c.h.b16 %v224
    %v555 = vunpack.c.l.b16 %v225
    %v556 = vunpack.c.h.b16 %v225
    %v557 = vunpack.c.l.b16 %v226
    %v558 = vunpack.c.h.b16 %v226
    %v559 = vunpack.c.l.b16 %v227
    %v560 = vunpack.c.l.b16 %v228
    %v561 = vunpack.c.h.b16 %v228
    %v562 = vunpack.c.l.b16 %v229
    %v563 = vunpack.c.h.b16 %v229
    %v564 = vunpack.c.l.b16 %v230
    %v565 = vunpack.c.h.b16 %v230
    %v566 = vunpack.c.l.b16 %v231
    %v567 = vunpack.c.h.b16 %v231
    %v568 = vunpack.c.l.b16 %v232
    %v569 = vpack.c.b16 %v362, %v353
    %v570 = vpack.c.b16 %v363, %v354
    %v571 = vpack.c.b16 %v364, %v355
    %v572 = vpack.c.b16 %v365, %v356
    %v573 = vpack.c.b16 %v366, %v357
    %v574 = vpack.c.b16 %v367, %v358
    %v575 = vpack.c.b16 %v368, %v359
    %v576 = vpack.c.b16 %v369, %v360
    %v577 = vpack.c.b16 %v370, %v361
    %v578 = vpack.c.b16 %v380, %v371
    %v579 = vpack.c.b16 %v381, %v372
    %v580 = vpack.c.b16 %v382, %v373
    %v581 = vpack.c.b16 %v383, %v374
    %v582 = vpack.c.b16 %v384, %v375
    %v583 = vpack.c.b16 %v385, %v376
    %v584 = vpack.c.b16 %v386, %v377
    %v585 = vpack.c.b16 %v387, %v378
    %v586 = vpack.c.b16 %v388, %v379
    %v587 = vpack.c.b16 %v398, %v389
    %v588 = vpack.c.b16 %v399, %v390
    %v589 = vpack.c.b16 %v400, %v391
    %v590 = vpack.c.b16 %v401, %v392
    %v591 = vpack.c.b16 %v402, %v393
    %v592 = vpack.c.b16 %v403, %v394
    %v593 = vpack.c.b16 %v404, %v395
    %v594 = vpack.c.b16 %v405, %v396
    %v595 = vpack.c.b16 %v406, %v397
    %v596 = vpack.c.b16 %v416, %v407
    %v597 = vpack.c.b16 %v417, %v408
    %v598 = vpack.c.b16 %v418, %v409
    %v599 = vpack.c.b16 %v419, %v410
    %v600 = vpack.c.b16 %v420, %v411
    %v601 = vpack.c.b16 %v421, %v412
    %v602 = vpack.c.b16 %v422, %v413
    %v603 = vpack.c.b16 %v423, %v414
    %v604 = vpack.c.b16 %v424, %v415
    %v605 = vpack.c.b16 %v434, %v425
    %v606 = vpack.c.b16 %v435, %v426
    %v607 = vpack.c.b16 %v436, %v427
    %v608 = vpack.c.b16 %v437, %v428
    %v609 = vpack.c.b16 %v438, %v429
    %v610 = vpack.c.b16 %v439, %v430
    %v611 = vpack.c.b16 %v440, %v431
    %v612 = vpack.c.b16 %v441, %v432
    %v613 = vpack.c.b16 %v442, %v433
    %v614 = vpack.c.b16 %v452, %v443
    %v615 = vpack.c.b16 %v453, %v444
    %v616 = vpack.c.b16 %v454, %v445
    %v617 = vpack.c.b16 %v455, %v446
    %v618 = vpack.c.b16 %v456, %v447
    %v619 = vpack.c.b16 %v457, %v448
    %v620 = vpack.c.b16 %v458, %v449
    %v621 = vpack.c.b16 %v459, %v450
    %v622 = vpack.c.b16 %v460, %v451
    %v623 = vpack.c.b16 %v470, %v461
    %v624 = vpack.c.b16 %v471, %v462
    %v625 = vpack.c.b16 %v472, %v463
    %v626 = vpack.c.b16 %v473, %v464
    %v627 = vpack.c.b16 %v474, %v465
    %v628 = vpack.c.b16 %v475, %v466
    %v629 = vpack.c.b16 %v476, %v467
    %v630 = vpack.c.b16 %v477, %v468
    %v631 = vpack.c.b16 %v478, %v469
    %v632 = vpack.c.b16 %v488, %v479
    %v633 = vpack.c.b16 %v489, %v480
    %v634 = vpack.c.b16 %v490, %v481
    %v635 = vpack.c.b16 %v491, %v482
    %v636 = vpack.c.b16 %v492, %v483
    %v637 = vpack.c.b16 %v493, %v484
    %v638 = vpack.c.b16 %v494, %v485
    %v639 = vpack.c.b16 %v495, %v486
    %v640 = vpack.c.b16 %v496, %v487
    %v641 = vpack.c.b16 %v506, %v497
    %v642 = vpack.c.b16 %v507, %v498
    %v643 = vpack.c.b16 %v508, %v499
    %v644 = vpack.c.b16 %v509, %v500
    %v645 = vpack.c.b16 %v510, %v501
    %v646 = vpack.c.b16 %v511, %v502
    %v647 = vpack.c.b16 %v512, %v503
    %v648 = vpack.c.b16 %v513, %v504
    %v649 = vpack.c.b16 %v514, %v505
    %v650 = vpack.c.b16 %v524, %v515
    %v651 = vpack.c.b16 %v525, %v516
    %v652 = vpack.c.b16 %v526, %v517
    %v653 = vpack.c.b16 %v527, %v518
    %v654 = vpack.c.b16 %v528, %v519
    %v655 = vpack.c.b16 %v529, %v520
    %v656 = vpack.c.b16 %v530, %v521
    %v657 = vpack.c.b16 %v531, %v522
    %v658 = vpack.c.b16 %v532, %v523
    %v659 = vpack.c.b16 %v542, %v533
    %v660 = vpack.c.b16 %v543, %v534
    %v661 = vpack.c.b16 %v544, %v535
    %v662 = vpack.c.b16 %v545, %v536
    %v663 = vpack.c.b16 %v546, %v537
    %v664 = vpack.c.b16 %v547, %v538
    %v665 = vpack.c.b16 %v548, %v539
    %v666 = vpack.c.b16 %v549, %v540
    %v667 = vpack.c.b16 %v550, %v541
    %v668 = vpack.c.b16 %v560, %v551
    %v669 = vpack.c.b16 %v561, %v552
    %v670 = vpack.c.b16 %v562, %v553
    %v671 = vpack.c.b16 %v563, %v554
    %v672 = vpack.c.b16 %v564, %v555
    %v673 = vpack.c.b16 %v565, %v556
    %v674 = vpack.c.b16 %v566, %v557
    %v675 = vpack.c.b16 %v567, %v558
    %v676 = vpack.c.b16 %v568, %v559
    %785 = vxpose.xlu0.c.b16.start [1/8] %v569, 128
    %786 = vxpose.xlu0.c.b16.cont [2/8] %v578, 128
    %787 = vxpose.xlu0.c.b16.cont [3/8] %v587, 128
    %788 = vxpose.xlu0.c.b16.cont [4/8] %v596, 128
    %789 = vxpose.xlu0.c.b16.cont [5/8] %v605, 128
    %790 = vxpose.xlu0.c.b16.cont [6/8] %v614, 128
    %791 = vxpose.xlu0.c.b16.cont [7/8] %v623, 128
    %792 = vxpose.xlu0.c.b16.end [8/8] %v632, 128
    %v793 = vpop.trf.xlu0
    %v794 = vpop.trf.xlu0
    %v795 = vpop.trf.xlu0
    %v796 = vpop.trf.xlu0
    %v797 = vpop.trf.xlu0
    %v798 = vpop.trf.xlu0
    %v799 = vpop.trf.xlu0
    %v800 = vpop.trf.xlu0
    %801 = vxpose.xlu0.c.b16.start [1/8] %v570, 128
    %802 = vxpose.xlu0.c.b16.cont [2/8] %v579, 128
    %803 = vxpose.xlu0.c.b16.cont [3/8] %v588, 128
    %804 = vxpose.xlu0.c.b16.cont [4/8] %v597, 128
    %805 = vxpose.xlu0.c.b16.cont [5/8] %v606, 128
    %806 = vxpose.xlu0.c.b16.cont [6/8] %v615, 128
    %807 = vxpose.xlu0.c.b16.cont [7/8] %v624, 128
    %808 = vxpose.xlu0.c.b16.end [8/8] %v633, 128
    %v809 = vpop.trf.xlu0
    %v810 = vpop.trf.xlu0
    %v811 = vpop.trf.xlu0
    %v812 = vpop.trf.xlu0
    %v813 = vpop.trf.xlu0
    %v814 = vpop.trf.xlu0
    %v815 = vpop.trf.xlu0
    %v816 = vpop.trf.xlu0
    %817 = vxpose.xlu0.c.b16.start [1/8] %v571, 128
    %818 = vxpose.xlu0.c.b16.cont [2/8] %v580, 128
    %819 = vxpose.xlu0.c.b16.cont [3/8] %v589, 128
    %820 = vxpose.xlu0.c.b16.cont [4/8] %v598, 128
    %821 = vxpose.xlu0.c.b16.cont [5/8] %v607, 128
    %822 = vxpose.xlu0.c.b16.cont [6/8] %v616, 128
    %823 = vxpose.xlu0.c.b16.cont [7/8] %v625, 128
    %824 = vxpose.xlu0.c.b16.end [8/8] %v634, 128
    %v825 = vpop.trf.xlu0
    %v826 = vpop.trf.xlu0
    %v827 = vpop.trf.xlu0
    %v828 = vpop.trf.xlu0
    %v829 = vpop.trf.xlu0
    %v830 = vpop.trf.xlu0
    %v831 = vpop.trf.xlu0
    %v832 = vpop.trf.xlu0
    %833 = vxpose.xlu0.c.b16.start [1/8] %v572, 128
    %834 = vxpose.xlu0.c.b16.cont [2/8] %v581, 128
    %835 = vxpose.xlu0.c.b16.cont [3/8] %v590, 128
    %836 = vxpose.xlu0.c.b16.cont [4/8] %v599, 128
    %837 = vxpose.xlu0.c.b16.cont [5/8] %v608, 128
    %838 = vxpose.xlu0.c.b16.cont [6/8] %v617, 128
    %839 = vxpose.xlu0.c.b16.cont [7/8] %v626, 128
    %840 = vxpose.xlu0.c.b16.end [8/8] %v635, 128
    %v841 = vpop.trf.xlu0
    %v842 = vpop.trf.xlu0
    %v843 = vpop.trf.xlu0
    %v844 = vpop.trf.xlu0
    %v845 = vpop.trf.xlu0
    %v846 = vpop.trf.xlu0
    %v847 = vpop.trf.xlu0
    %v848 = vpop.trf.xlu0
    %849 = vxpose.xlu0.c.b16.start [1/8] %v573, 128
    %850 = vxpose.xlu0.c.b16.cont [2/8] %v582, 128
    %851 = vxpose.xlu0.c.b16.cont [3/8] %v591, 128
    %852 = vxpose.xlu0.c.b16.cont [4/8] %v600, 128
    %853 = vxpose.xlu0.c.b16.cont [5/8] %v609, 128
    %854 = vxpose.xlu0.c.b16.cont [6/8] %v618, 128
    %855 = vxpose.xlu0.c.b16.cont [7/8] %v627, 128
    %856 = vxpose.xlu0.c.b16.end [8/8] %v636, 128
    %v857 = vpop.trf.xlu0
    %v858 = vpop.trf.xlu0
    %v859 = vpop.trf.xlu0
    %v860 = vpop.trf.xlu0
    %v861 = vpop.trf.xlu0
    %v862 = vpop.trf.xlu0
    %v863 = vpop.trf.xlu0
    %v864 = vpop.trf.xlu0
    %865 = vxpose.xlu0.c.b16.start [1/8] %v574, 128
    %866 = vxpose.xlu0.c.b16.cont [2/8] %v583, 128
    %867 = vxpose.xlu0.c.b16.cont [3/8] %v592, 128
    %868 = vxpose.xlu0.c.b16.cont [4/8] %v601, 128
    %869 = vxpose.xlu0.c.b16.cont [5/8] %v610, 128
    %870 = vxpose.xlu0.c.b16.cont [6/8] %v619, 128
    %871 = vxpose.xlu0.c.b16.cont [7/8] %v628, 128
    %872 = vxpose.xlu0.c.b16.end [8/8] %v637, 128
    %v873 = vpop.trf.xlu0
    %v874 = vpop.trf.xlu0
    %v875 = vpop.trf.xlu0
    %v876 = vpop.trf.xlu0
    %v877 = vpop.trf.xlu0
    %v878 = vpop.trf.xlu0
    %v879 = vpop.trf.xlu0
    %v880 = vpop.trf.xlu0
    %881 = vxpose.xlu0.c.b16.start [1/8] %v575, 128
    %882 = vxpose.xlu0.c.b16.cont [2/8] %v584, 128
    %883 = vxpose.xlu0.c.b16.cont [3/8] %v593, 128
    %884 = vxpose.xlu0.c.b16.cont [4/8] %v602, 128
    %885 = vxpose.xlu0.c.b16.cont [5/8] %v611, 128
    %886 = vxpose.xlu0.c.b16.cont [6/8] %v620, 128
    %887 = vxpose.xlu0.c.b16.cont [7/8] %v629, 128
    %888 = vxpose.xlu0.c.b16.end [8/8] %v638, 128
    %v889 = vpop.trf.xlu0
    %v890 = vpop.trf.xlu0
    %v891 = vpop.trf.xlu0
    %v892 = vpop.trf.xlu0
    %v893 = vpop.trf.xlu0
    %v894 = vpop.trf.xlu0
    %v895 = vpop.trf.xlu0
    %v896 = vpop.trf.xlu0
    %897 = vxpose.xlu0.c.b16.start [1/8] %v576, 128
    %898 = vxpose.xlu0.c.b16.cont [2/8] %v585, 128
    %899 = vxpose.xlu0.c.b16.cont [3/8] %v594, 128
    %900 = vxpose.xlu0.c.b16.cont [4/8] %v603, 128
    %901 = vxpose.xlu0.c.b16.cont [5/8] %v612, 128
    %902 = vxpose.xlu0.c.b16.cont [6/8] %v621, 128
    %903 = vxpose.xlu0.c.b16.cont [7/8] %v630, 128
    %904 = vxpose.xlu0.c.b16.end [8/8] %v639, 128
    %v905 = vpop.trf.xlu0
    %v906 = vpop.trf.xlu0
    %v907 = vpop.trf.xlu0
    %v908 = vpop.trf.xlu0
    %v909 = vpop.trf.xlu0
    %v910 = vpop.trf.xlu0
    %v911 = vpop.trf.xlu0
    %v912 = vpop.trf.xlu0
    %913 = vxpose.xlu0.c.b16.start [1/8] %v577, 128
    %914 = vxpose.xlu0.c.b16.cont [2/8] %v586, 128
    %915 = vxpose.xlu0.c.b16.cont [3/8] %v595, 128
    %916 = vxpose.xlu0.c.b16.cont [4/8] %v604, 128
    %917 = vxpose.xlu0.c.b16.cont [5/8] %v613, 128
    %918 = vxpose.xlu0.c.b16.cont [6/8] %v622, 128
    %919 = vxpose.xlu0.c.b16.cont [7/8] %v631, 128
    %920 = vxpose.xlu0.c.b16.end [8/8] %v640, 128
    %v921 = vpop.trf.xlu0
    %v922 = vpop.trf.xlu0
    %v923 = vpop.trf.xlu0
    %v924 = vpop.trf.xlu0
    %v925 = vpop.trf.xlu0
    %v926 = vpop.trf.xlu0
    %v927 = vpop.trf.xlu0
    %v928 = vpop.trf.xlu0
    %929 = vxpose.xlu0.c.b16.start [1/8] %v641, 128
    %930 = vxpose.xlu0.c.b16.cont [2/8] %v650, 128
    %931 = vxpose.xlu0.c.b16.cont [3/8] %v659, 128
    %932 = vxpose.xlu0.c.b16.cont [4/8] %v668, 128
    %933 = vxpose.xlu0.c.b16.cont [5/8] 0, 128
    %934 = vxpose.xlu0.c.b16.cont [6/8] 0, 128
    %935 = vxpose.xlu0.c.b16.cont [7/8] 0, 128
    %936 = vxpose.xlu0.c.b16.end [8/8] 0, 128
    %v937 = vpop.trf.xlu0
    %v938 = vpop.trf.xlu0
    %v939 = vpop.trf.xlu0
    %v940 = vpop.trf.xlu0
    %v941 = vpop.trf.xlu0
    %v942 = vpop.trf.xlu0
    %v943 = vpop.trf.xlu0
    %v944 = vpop.trf.xlu0
    %945 = vxpose.xlu0.c.b16.start [1/8] %v642, 128
    %946 = vxpose.xlu0.c.b16.cont [2/8] %v651, 128
    %947 = vxpose.xlu0.c.b16.cont [3/8] %v660, 128
    %948 = vxpose.xlu0.c.b16.cont [4/8] %v669, 128
    %949 = vxpose.xlu0.c.b16.cont [5/8] 0, 128
    %950 = vxpose.xlu0.c.b16.cont [6/8] 0, 128
    %951 = vxpose.xlu0.c.b16.cont [7/8] 0, 128
    %952 = vxpose.xlu0.c.b16.end [8/8] 0, 128
    %v953 = vpop.trf.xlu0
    %v954 = vpop.trf.xlu0
    %v955 = vpop.trf.xlu0
    %v956 = vpop.trf.xlu0
    %v957 = vpop.trf.xlu0
    %v958 = vpop.trf.xlu0
    %v959 = vpop.trf.xlu0
    %v960 = vpop.trf.xlu0
    %961 = vxpose.xlu0.c.b16.start [1/8] %v643, 128
    %962 = vxpose.xlu0.c.b16.cont [2/8] %v652, 128
    %963 = vxpose.xlu0.c.b16.cont [3/8] %v661, 128
    %964 = vxpose.xlu0.c.b16.cont [4/8] %v670, 128
    %965 = vxpose.xlu0.c.b16.cont [5/8] 0, 128
    %966 = vxpose.xlu0.c.b16.cont [6/8] 0, 128
    %967 = vxpose.xlu0.c.b16.cont [7/8] 0, 128
    %968 = vxpose.xlu0.c.b16.end [8/8] 0, 128
    %v969 = vpop.trf.xlu0
    %v970 = vpop.trf.xlu0
    %v971 = vpop.trf.xlu0
    %v972 = vpop.trf.xlu0
    %v973 = vpop.trf.xlu0
    %v974 = vpop.trf.xlu0
    %v975 = vpop.trf.xlu0
    %v976 = vpop.trf.xlu0
    %977 = vxpose.xlu0.c.b16.start [1/8] %v644, 128
    %978 = vxpose.xlu0.c.b16.cont [2/8] %v653, 128
    %979 = vxpose.xlu0.c.b16.cont [3/8] %v662, 128
    %980 = vxpose.xlu0.c.b16.cont [4/8] %v671, 128
    %981 = vxpose.xlu0.c.b16.cont [5/8] 0, 128
    %982 = vxpose.xlu0.c.b16.cont [6/8] 0, 128
    %983 = vxpose.xlu0.c.b16.cont [7/8] 0, 128
    %984 = vxpose.xlu0.c.b16.end [8/8] 0, 128
    %v985 = vpop.trf.xlu0
    %v986 = vpop.trf.xlu0
    %v987 = vpop.trf.xlu0
    %v988 = vpop.trf.xlu0
    %v989 = vpop.trf.xlu0
    %v990 = vpop.trf.xlu0
    %v991 = vpop.trf.xlu0
    %v992 = vpop.trf.xlu0
    %993 = vxpose.xlu0.c.b16.start [1/8] %v645, 128
    %994 = vxpose.xlu0.c.b16.cont [2/8] %v654, 128
    %995 = vxpose.xlu0.c.b16.cont [3/8] %v663, 128
    %996 = vxpose.xlu0.c.b16.cont [4/8] %v672, 128
    %997 = vxpose.xlu0.c.b16.cont [5/8] 0, 128
    %998 = vxpose.xlu0.c.b16.cont [6/8] 0, 128
    %999 = vxpose.xlu0.c.b16.cont [7/8] 0, 128
    %1000 = vxpose.xlu0.c.b16.end [8/8] 0, 128
    %v1001 = vpop.trf.xlu0
    %v1002 = vpop.trf.xlu0
    %v1003 = vpop.trf.xlu0
    %v1004 = vpop.trf.xlu0
    %v1005 = vpop.trf.xlu0
    %v1006 = vpop.trf.xlu0
    %v1007 = vpop.trf.xlu0
    %v1008 = vpop.trf.xlu0
    %1009 = vxpose.xlu0.c.b16.start [1/8] %v646, 128
    %1010 = vxpose.xlu0.c.b16.cont [2/8] %v655, 128
    %1011 = vxpose.xlu0.c.b16.cont [3/8] %v664, 128
    %1012 = vxpose.xlu0.c.b16.cont [4/8] %v673, 128
    %1013 = vxpose.xlu0.c.b16.cont [5/8] 0, 128
    %1014 = vxpose.xlu0.c.b16.cont [6/8] 0, 128
    %1015 = vxpose.xlu0.c.b16.cont [7/8] 0, 128
    %1016 = vxpose.xlu0.c.b16.end [8/8] 0, 128
    %v1017 = vpop.trf.xlu0
    %v1018 = vpop.trf.xlu0
    %v1019 = vpop.trf.xlu0
    %v1020 = vpop.trf.xlu0
    %v1021 = vpop.trf.xlu0
    %v1022 = vpop.trf.xlu0
    %v1023 = vpop.trf.xlu0
    %v1024 = vpop.trf.xlu0
    %1025 = vxpose.xlu0.c.b16.start [1/8] %v647, 128
    %1026 = vxpose.xlu0.c.b16.cont [2/8] %v656, 128
    %1027 = vxpose.xlu0.c.b16.cont [3/8] %v665, 128
    %1028 = vxpose.xlu0.c.b16.cont [4/8] %v674, 128
    %1029 = vxpose.xlu0.c.b16.cont [5/8] 0, 128
    %1030 = vxpose.xlu0.c.b16.cont [6/8] 0, 128
    %1031 = vxpose.xlu0.c.b16.cont [7/8] 0, 128
    %1032 = vxpose.xlu0.c.b16.end [8/8] 0, 128
    %v1033 = vpop.trf.xlu0
    %v1034 = vpop.trf.xlu0
    %v1035 = vpop.trf.xlu0
    %v1036 = vpop.trf.xlu0
    %v1037 = vpop.trf.xlu0
    %v1038 = vpop.trf.xlu0
    %v1039 = vpop.trf.xlu0
    %v1040 = vpop.trf.xlu0
    %1041 = vxpose.xlu0.c.b16.start [1/8] %v648, 128
    %1042 = vxpose.xlu0.c.b16.cont [2/8] %v657, 128
    %1043 = vxpose.xlu0.c.b16.cont [3/8] %v666, 128
    %1044 = vxpose.xlu0.c.b16.cont [4/8] %v675, 128
    %1045 = vxpose.xlu0.c.b16.cont [5/8] 0, 128
    %1046 = vxpose.xlu0.c.b16.cont [6/8] 0, 128
    %1047 = vxpose.xlu0.c.b16.cont [7/8] 0, 128
    %1048 = vxpose.xlu0.c.b16.end [8/8] 0, 128
    %v1049 = vpop.trf.xlu0
    %v1050 = vpop.trf.xlu0
    %v1051 = vpop.trf.xlu0
    %v1052 = vpop.trf.xlu0
    %v1053 = vpop.trf.xlu0
    %v1054 = vpop.trf.xlu0
    %v1055 = vpop.trf.xlu0
    %v1056 = vpop.trf.xlu0
    %1057 = vxpose.xlu0.c.b16.start [1/8] %v649, 128
    %1058 = vxpose.xlu0.c.b16.cont [2/8] %v658, 128
    %1059 = vxpose.xlu0.c.b16.cont [3/8] %v667, 128
    %1060 = vxpose.xlu0.c.b16.cont [4/8] %v676, 128
    %1061 = vxpose.xlu0.c.b16.cont [5/8] 0, 128
    %1062 = vxpose.xlu0.c.b16.cont [6/8] 0, 128
    %1063 = vxpose.xlu0.c.b16.cont [7/8] 0, 128
    %1064 = vxpose.xlu0.c.b16.end [8/8] 0, 128
    %v1065 = vpop.trf.xlu0
    %v1066 = vpop.trf.xlu0
    %v1067 = vpop.trf.xlu0
    %v1068 = vpop.trf.xlu0
    %v1069 = vpop.trf.xlu0
    %v1070 = vpop.trf.xlu0
    %v1071 = vpop.trf.xlu0
    %v1072 = vpop.trf.xlu0
    %vm1073 = vcmask 523264
    %v1075 = vsel %vm1073, %v937, 0
    %v1078 = vsel %vm1073, %v938, 0
    %v1081 = vsel %vm1073, %v939, 0
    %v1084 = vsel %vm1073, %v940, 0
    %v1087 = vsel %vm1073, %v941, 0
    %v1090 = vsel %vm1073, %v942, 0
    %v1093 = vsel %vm1073, %v943, 0
    %v1096 = vsel %vm1073, %v944, 0
    %v1099 = vsel %vm1073, %v953, 0
    %v1102 = vsel %vm1073, %v954, 0
    %v1105 = vsel %vm1073, %v955, 0
    %v1108 = vsel %vm1073, %v956, 0
    %v1111 = vsel %vm1073, %v957, 0
    %v1114 = vsel %vm1073, %v958, 0
    %v1117 = vsel %vm1073, %v959, 0
    %v1120 = vsel %vm1073, %v960, 0
    %v1123 = vsel %vm1073, %v969, 0
    %v1126 = vsel %vm1073, %v970, 0
    %v1129 = vsel %vm1073, %v971, 0
    %v1132 = vsel %vm1073, %v972, 0
    %v1135 = vsel %vm1073, %v973, 0
    %v1138 = vsel %vm1073, %v974, 0
    %v1141 = vsel %vm1073, %v975, 0
    %v1144 = vsel %vm1073, %v976, 0
    %v1147 = vsel %vm1073, %v985, 0
    %v1150 = vsel %vm1073, %v986, 0
    %v1153 = vsel %vm1073, %v987, 0
    %v1156 = vsel %vm1073, %v988, 0
    %v1159 = vsel %vm1073, %v989, 0
    %v1162 = vsel %vm1073, %v990, 0
    %v1165 = vsel %vm1073, %v991, 0
    %v1168 = vsel %vm1073, %v992, 0
    %v1171 = vsel %vm1073, %v1001, 0
    %v1174 = vsel %vm1073, %v1002, 0
    %v1177 = vsel %vm1073, %v1003, 0
    %v1180 = vsel %vm1073, %v1004, 0
    %v1183 = vsel %vm1073, %v1005, 0
    %v1186 = vsel %vm1073, %v1006, 0
    %v1189 = vsel %vm1073, %v1007, 0
    %v1192 = vsel %vm1073, %v1008, 0
    %v1195 = vsel %vm1073, %v1017, 0
    %v1198 = vsel %vm1073, %v1018, 0
    %v1201 = vsel %vm1073, %v1019, 0
    %v1204 = vsel %vm1073, %v1020, 0
    %v1207 = vsel %vm1073, %v1021, 0
    %v1210 = vsel %vm1073, %v1022, 0
    %v1213 = vsel %vm1073, %v1023, 0
    %v1216 = vsel %vm1073, %v1024, 0
    %v1219 = vsel %vm1073, %v1033, 0
    %v1222 = vsel %vm1073, %v1034, 0
    %v1225 = vsel %vm1073, %v1035, 0
    %v1228 = vsel %vm1073, %v1036, 0
    %v1231 = vsel %vm1073, %v1037, 0
    %v1234 = vsel %vm1073, %v1038, 0
    %v1237 = vsel %vm1073, %v1039, 0
    %v1240 = vsel %vm1073, %v1040, 0
    %v1243 = vsel %vm1073, %v1049, 0
    %v1246 = vsel %vm1073, %v1050, 0
    %v1249 = vsel %vm1073, %v1051, 0
    %v1252 = vsel %vm1073, %v1052, 0
    %v1255 = vsel %vm1073, %v1053, 0
    %v1258 = vsel %vm1073, %v1054, 0
    %v1261 = vsel %vm1073, %v1055, 0
    %v1264 = vsel %vm1073, %v1056, 0
    %v1267 = vsel %vm1073, %v1065, 0
    %v1270 = vsel %vm1073, %v1066, 0
    %v1273 = vsel %vm1073, %v1067, 0
    %v1276 = vsel %vm1073, %v1068, 0
    %v1279 = vsel %vm1073, %v1069, 0
    %v1282 = vsel %vm1073, %v1070, 0
    %v1285 = vsel %vm1073, %v1071, 0
    %v1288 = vsel %vm1073, %v1072, 0
    %1290 = vmatprep.subr.bf16.mxu0 0
    %1291 = vmatpush1.bf16.msra.mxu0 %v108
    %1292 = vmatprep.subr.bf16.mxu0 0
    %1293 = vmatpush1.bf16.msra.mxu0 %v107
    %1294 = vmatprep.subr.bf16.mxu0 0
    %1295 = vmatpush1.bf16.msra.mxu0 %v106
    %1296 = vmatprep.subr.bf16.mxu0 0
    %1297 = vmatpush1.bf16.msra.mxu0 %v105
    %1298 = vmatprep.subr.bf16.mxu0 0
    %1299 = vmatpush1.bf16.msra.mxu0 %v104
    %1300 = vmatprep.subr.bf16.mxu0 0
    %1301 = vmatpush1.bf16.msra.mxu0 %v103
    %1302 = vmatprep.subr.bf16.mxu0 0
    %1303 = vmatpush1.bf16.msra.mxu0 %v102
    %1304 = vmatprep.subr.bf16.mxu0 0
    %1305 = vmatpush1.bf16.msra.mxu0 %v101
    %1306 = vmatprep.subr.bf16.mxu0 0
    %1307 = vmatpush2.bf16.msra.mxu0 0
    %1308 = vmatprep.subr.bf16.mxu0 0
    %1309 = vmatpush2.bf16.msra.mxu0 0
    %1310 = vmatprep.subr.bf16.mxu0 0
    %1311 = vmatpush2.bf16.msra.mxu0 0
    %1312 = vmatprep.subr.bf16.mxu0 0
    %1313 = vmatpush2.bf16.msra.mxu0 0
    %1314 = vmatprep.subr.bf16.mxu0 0
    %1315 = vmatpush2.bf16.msra.mxu0 %v112
    %1316 = vmatprep.subr.bf16.mxu0 0
    %1317 = vmatpush2.bf16.msra.mxu0 %v111
    %1318 = vmatprep.subr.bf16.mxu0 0
    %1319 = vmatpush2.bf16.msra.mxu0 %v110
    %1320 = vmatprep.subr.bf16.mxu0 0
    %1321 = vmatpush2.bf16.msra.mxu0 %v109
    %1322 = vmatprep.mubr.bf16.mxu0 %v1075
    %1323 = vmatmul.mubr.bf16.gmra.mxu0 %v793
    %v1324 = vpop.f32.mrf.mxu0
    %v1325 = vadd.f32 0.0, %v1324
    %v1326 = vpop.f32.mrf.mxu0
    %v1327 = vpop.f32.mrf.mxu0
    %v1328 = vadd.f32 0.0, %v1327
    %v1329 = vpop.f32.mrf.mxu0
    %1330 = vmatprep.mubr.bf16.mxu0 %v1078
    %1331 = vmatmul.mubr.bf16.gmra.mxu0 %v794
    %v1332 = vpop.f32.mrf.mxu0
    %v1333 = vadd.f32 0.0, %v1332
    %v1334 = vpop.f32.mrf.mxu0
    %v1335 = vpop.f32.mrf.mxu0
    %v1336 = vadd.f32 0.0, %v1335
    %v1337 = vpop.f32.mrf.mxu0
    %1338 = vmatprep.mubr.bf16.mxu0 %v1081
    %1339 = vmatmul.mubr.bf16.gmra.mxu0 %v795
    %v1340 = vpop.f32.mrf.mxu0
    %v1341 = vadd.f32 0.0, %v1340
    %v1342 = vpop.f32.mrf.mxu0
    %v1343 = vpop.f32.mrf.mxu0
    %v1344 = vadd.f32 0.0, %v1343
    %v1345 = vpop.f32.mrf.mxu0
    %1346 = vmatprep.mubr.bf16.mxu0 %v1084
    %1347 = vmatmul.mubr.bf16.gmra.mxu0 %v796
    %v1348 = vpop.f32.mrf.mxu0
    %v1349 = vadd.f32 0.0, %v1348
    %v1350 = vpop.f32.mrf.mxu0
    %v1351 = vpop.f32.mrf.mxu0
    %v1352 = vadd.f32 0.0, %v1351
    %v1353 = vpop.f32.mrf.mxu0
    %1354 = vmatprep.mubr.bf16.mxu0 %v1087
    %1355 = vmatmul.mubr.bf16.gmra.mxu0 %v797
    %v1356 = vpop.f32.mrf.mxu0
    %v1357 = vadd.f32 0.0, %v1356
    %v1358 = vpop.f32.mrf.mxu0
    %v1359 = vpop.f32.mrf.mxu0
    %v1360 = vadd.f32 0.0, %v1359
    %v1361 = vpop.f32.mrf.mxu0
    %1362 = vmatprep.mubr.bf16.mxu0 %v1090
    %1363 = vmatmul.mubr.bf16.gmra.mxu0 %v798
    %v1364 = vpop.f32.mrf.mxu0
    %v1365 = vadd.f32 0.0, %v1364
    %v1366 = vpop.f32.mrf.mxu0
    %v1367 = vpop.f32.mrf.mxu0
    %v1368 = vadd.f32 0.0, %v1367
    %v1369 = vpop.f32.mrf.mxu0
    %1370 = vmatprep.mubr.bf16.mxu0 %v1093
    %1371 = vmatmul.mubr.bf16.gmra.mxu0 %v799
    %v1372 = vpop.f32.mrf.mxu0
    %v1373 = vadd.f32 0.0, %v1372
    %v1374 = vpop.f32.mrf.mxu0
    %v1375 = vpop.f32.mrf.mxu0
    %v1376 = vadd.f32 0.0, %v1375
    %v1377 = vpop.f32.mrf.mxu0
    %1378 = vmatprep.mubr.bf16.mxu0 %v1096
    %1379 = vmatmul.mubr.bf16.gmra.mxu0 %v800
    %v1380 = vpop.f32.mrf.mxu0
    %v1381 = vadd.f32 0.0, %v1380
    %v1382 = vpop.f32.mrf.mxu0
    %v1383 = vpop.f32.mrf.mxu0
    %v1384 = vadd.f32 0.0, %v1383
    %v1385 = vpop.f32.mrf.mxu0
    %1386 = vmatprep.mubr.bf16.mxu0 %v1099
    %1387 = vmatmul.mubr.bf16.gmra.mxu0 %v809
    %v1388 = vpop.f32.mrf.mxu0
    %v1389 = vadd.f32 0.0, %v1388
    %v1390 = vpop.f32.mrf.mxu0
    %v1391 = vpop.f32.mrf.mxu0
    %v1392 = vadd.f32 0.0, %v1391
    %v1393 = vpop.f32.mrf.mxu0
    %1394 = vmatprep.mubr.bf16.mxu0 %v1102
    %1395 = vmatmul.mubr.bf16.gmra.mxu0 %v810
    %v1396 = vpop.f32.mrf.mxu0
    %v1397 = vadd.f32 0.0, %v1396
    %v1398 = vpop.f32.mrf.mxu0
    %v1399 = vpop.f32.mrf.mxu0
    %v1400 = vadd.f32 0.0, %v1399
    %v1401 = vpop.f32.mrf.mxu0
    %1402 = vmatprep.mubr.bf16.mxu0 %v1105
    %1403 = vmatmul.mubr.bf16.gmra.mxu0 %v811
    %v1404 = vpop.f32.mrf.mxu0
    %v1405 = vadd.f32 0.0, %v1404
    %v1406 = vpop.f32.mrf.mxu0
    %v1407 = vpop.f32.mrf.mxu0
    %v1408 = vadd.f32 0.0, %v1407
    %v1409 = vpop.f32.mrf.mxu0
    %1410 = vmatprep.mubr.bf16.mxu0 %v1108
    %1411 = vmatmul.mubr.bf16.gmra.mxu0 %v812
    %v1412 = vpop.f32.mrf.mxu0
    %v1413 = vadd.f32 0.0, %v1412
    %v1414 = vpop.f32.mrf.mxu0
    %v1415 = vpop.f32.mrf.mxu0
    %v1416 = vadd.f32 0.0, %v1415
    %v1417 = vpop.f32.mrf.mxu0
    %1418 = vmatprep.mubr.bf16.mxu0 %v1111
    %1419 = vmatmul.mubr.bf16.gmra.mxu0 %v813
    %v1420 = vpop.f32.mrf.mxu0
    %v1421 = vadd.f32 0.0, %v1420
    %v1422 = vpop.f32.mrf.mxu0
    %v1423 = vpop.f32.mrf.mxu0
    %v1424 = vadd.f32 0.0, %v1423
    %v1425 = vpop.f32.mrf.mxu0
    %1426 = vmatprep.mubr.bf16.mxu0 %v1114
    %1427 = vmatmul.mubr.bf16.gmra.mxu0 %v814
    %v1428 = vpop.f32.mrf.mxu0
    %v1429 = vadd.f32 0.0, %v1428
    %v1430 = vpop.f32.mrf.mxu0
    %v1431 = vpop.f32.mrf.mxu0
    %v1432 = vadd.f32 0.0, %v1431
    %v1433 = vpop.f32.mrf.mxu0
    %1434 = vmatprep.mubr.bf16.mxu0 %v1117
    %1435 = vmatmul.mubr.bf16.gmra.mxu0 %v815
    %v1436 = vpop.f32.mrf.mxu0
    %v1437 = vadd.f32 0.0, %v1436
    %v1438 = vpop.f32.mrf.mxu0
    %v1439 = vpop.f32.mrf.mxu0
    %v1440 = vadd.f32 0.0, %v1439
    %v1441 = vpop.f32.mrf.mxu0
    %1442 = vmatprep.mubr.bf16.mxu0 %v1120
    %1443 = vmatmul.mubr.bf16.gmra.mxu0 %v816
    %v1444 = vpop.f32.mrf.mxu0
    %v1445 = vadd.f32 0.0, %v1444
    %v1446 = vpop.f32.mrf.mxu0
    %v1447 = vpop.f32.mrf.mxu0
    %v1448 = vadd.f32 0.0, %v1447
    %v1449 = vpop.f32.mrf.mxu0
    %1450 = vmatprep.mubr.bf16.mxu0 %v1123
    %1451 = vmatmul.mubr.bf16.gmra.mxu0 %v825
    %v1452 = vpop.f32.mrf.mxu0
    %v1453 = vadd.f32 0.0, %v1452
    %v1454 = vpop.f32.mrf.mxu0
    %v1455 = vpop.f32.mrf.mxu0
    %v1456 = vadd.f32 0.0, %v1455
    %v1457 = vpop.f32.mrf.mxu0
    %1458 = vmatprep.mubr.bf16.mxu0 %v1126
    %1459 = vmatmul.mubr.bf16.gmra.mxu0 %v826
    %v1460 = vpop.f32.mrf.mxu0
    %v1461 = vadd.f32 0.0, %v1460
    %v1462 = vpop.f32.mrf.mxu0
    %v1463 = vpop.f32.mrf.mxu0
    %v1464 = vadd.f32 0.0, %v1463
    %v1465 = vpop.f32.mrf.mxu0
    %1466 = vmatprep.mubr.bf16.mxu0 %v1129
    %1467 = vmatmul.mubr.bf16.gmra.mxu0 %v827
    %v1468 = vpop.f32.mrf.mxu0
    %v1469 = vadd.f32 0.0, %v1468
    %v1470 = vpop.f32.mrf.mxu0
    %v1471 = vpop.f32.mrf.mxu0
    %v1472 = vadd.f32 0.0, %v1471
    %v1473 = vpop.f32.mrf.mxu0
    %1474 = vmatprep.mubr.bf16.mxu0 %v1132
    %1475 = vmatmul.mubr.bf16.gmra.mxu0 %v828
    %v1476 = vpop.f32.mrf.mxu0
    %v1477 = vadd.f32 0.0, %v1476
    %v1478 = vpop.f32.mrf.mxu0
    %v1479 = vpop.f32.mrf.mxu0
    %v1480 = vadd.f32 0.0, %v1479
    %v1481 = vpop.f32.mrf.mxu0
    %1482 = vmatprep.mubr.bf16.mxu0 %v1135
    %1483 = vmatmul.mubr.bf16.gmra.mxu0 %v829
    %v1484 = vpop.f32.mrf.mxu0
    %v1485 = vadd.f32 0.0, %v1484
    %v1486 = vpop.f32.mrf.mxu0
    %v1487 = vpop.f32.mrf.mxu0
    %v1488 = vadd.f32 0.0, %v1487
    %v1489 = vpop.f32.mrf.mxu0
    %1490 = vmatprep.mubr.bf16.mxu0 %v1138
    %1491 = vmatmul.mubr.bf16.gmra.mxu0 %v830
    %v1492 = vpop.f32.mrf.mxu0
    %v1493 = vadd.f32 0.0, %v1492
    %v1494 = vpop.f32.mrf.mxu0
    %v1495 = vpop.f32.mrf.mxu0
    %v1496 = vadd.f32 0.0, %v1495
    %v1497 = vpop.f32.mrf.mxu0
    %1498 = vmatprep.mubr.bf16.mxu0 %v1141
    %1499 = vmatmul.mubr.bf16.gmra.mxu0 %v831
    %v1500 = vpop.f32.mrf.mxu0
    %v1501 = vadd.f32 0.0, %v1500
    %v1502 = vpop.f32.mrf.mxu0
    %v1503 = vpop.f32.mrf.mxu0
    %v1504 = vadd.f32 0.0, %v1503
    %v1505 = vpop.f32.mrf.mxu0
    %1506 = vmatprep.mubr.bf16.mxu0 %v1144
    %1507 = vmatmul.mubr.bf16.gmra.mxu0 %v832
    %v1508 = vpop.f32.mrf.mxu0
    %v1509 = vadd.f32 0.0, %v1508
    %v1510 = vpop.f32.mrf.mxu0
    %v1511 = vpop.f32.mrf.mxu0
    %v1512 = vadd.f32 0.0, %v1511
    %v1513 = vpop.f32.mrf.mxu0
    %1514 = vmatprep.mubr.bf16.mxu0 %v1147
    %1515 = vmatmul.mubr.bf16.gmra.mxu0 %v841
    %v1516 = vpop.f32.mrf.mxu0
    %v1517 = vadd.f32 0.0, %v1516
    %v1518 = vpop.f32.mrf.mxu0
    %v1519 = vpop.f32.mrf.mxu0
    %v1520 = vadd.f32 0.0, %v1519
    %v1521 = vpop.f32.mrf.mxu0
    %1522 = vmatprep.mubr.bf16.mxu0 %v1150
    %1523 = vmatmul.mubr.bf16.gmra.mxu0 %v842
    %v1524 = vpop.f32.mrf.mxu0
    %v1525 = vadd.f32 0.0, %v1524
    %v1526 = vpop.f32.mrf.mxu0
    %v1527 = vpop.f32.mrf.mxu0
    %v1528 = vadd.f32 0.0, %v1527
    %v1529 = vpop.f32.mrf.mxu0
    %1530 = vmatprep.mubr.bf16.mxu0 %v1153
    %1531 = vmatmul.mubr.bf16.gmra.mxu0 %v843
    %v1532 = vpop.f32.mrf.mxu0
    %v1533 = vadd.f32 0.0, %v1532
    %v1534 = vpop.f32.mrf.mxu0
    %v1535 = vpop.f32.mrf.mxu0
    %v1536 = vadd.f32 0.0, %v1535
    %v1537 = vpop.f32.mrf.mxu0
    %1538 = vmatprep.mubr.bf16.mxu0 %v1156
    %1539 = vmatmul.mubr.bf16.gmra.mxu0 %v844
    %v1540 = vpop.f32.mrf.mxu0
    %v1541 = vadd.f32 0.0, %v1540
    %v1542 = vpop.f32.mrf.mxu0
    %v1543 = vpop.f32.mrf.mxu0
    %v1544 = vadd.f32 0.0, %v1543
    %v1545 = vpop.f32.mrf.mxu0
    %1546 = vmatprep.mubr.bf16.mxu0 %v1159
    %1547 = vmatmul.mubr.bf16.gmra.mxu0 %v845
    %v1548 = vpop.f32.mrf.mxu0
    %v1549 = vadd.f32 0.0, %v1548
    %v1550 = vpop.f32.mrf.mxu0
    %v1551 = vpop.f32.mrf.mxu0
    %v1552 = vadd.f32 0.0, %v1551
    %v1553 = vpop.f32.mrf.mxu0
    %1554 = vmatprep.mubr.bf16.mxu0 %v1162
    %1555 = vmatmul.mubr.bf16.gmra.mxu0 %v846
    %v1556 = vpop.f32.mrf.mxu0
    %v1557 = vadd.f32 0.0, %v1556
    %v1558 = vpop.f32.mrf.mxu0
    %v1559 = vpop.f32.mrf.mxu0
    %v1560 = vadd.f32 0.0, %v1559
    %v1561 = vpop.f32.mrf.mxu0
    %1562 = vmatprep.mubr.bf16.mxu0 %v1165
    %1563 = vmatmul.mubr.bf16.gmra.mxu0 %v847
    %v1564 = vpop.f32.mrf.mxu0
    %v1565 = vadd.f32 0.0, %v1564
    %v1566 = vpop.f32.mrf.mxu0
    %v1567 = vpop.f32.mrf.mxu0
    %v1568 = vadd.f32 0.0, %v1567
    %v1569 = vpop.f32.mrf.mxu0
    %1570 = vmatprep.mubr.bf16.mxu0 %v1168
    %1571 = vmatmul.mubr.bf16.gmra.mxu0 %v848
    %v1572 = vpop.f32.mrf.mxu0
    %v1573 = vadd.f32 0.0, %v1572
    %v1574 = vpop.f32.mrf.mxu0
    %v1575 = vpop.f32.mrf.mxu0
    %v1576 = vadd.f32 0.0, %v1575
    %v1577 = vpop.f32.mrf.mxu0
    %1578 = vmatprep.mubr.bf16.mxu0 %v1171
    %1579 = vmatmul.mubr.bf16.gmra.mxu0 %v857
    %v1580 = vpop.f32.mrf.mxu0
    %v1581 = vadd.f32 0.0, %v1580
    %v1582 = vpop.f32.mrf.mxu0
    %v1583 = vpop.f32.mrf.mxu0
    %v1584 = vadd.f32 0.0, %v1583
    %v1585 = vpop.f32.mrf.mxu0
    %1586 = vmatprep.mubr.bf16.mxu0 %v1174
    %1587 = vmatmul.mubr.bf16.gmra.mxu0 %v858
    %v1588 = vpop.f32.mrf.mxu0
    %v1589 = vadd.f32 0.0, %v1588
    %v1590 = vpop.f32.mrf.mxu0
    %v1591 = vpop.f32.mrf.mxu0
    %v1592 = vadd.f32 0.0, %v1591
    %v1593 = vpop.f32.mrf.mxu0
    %1594 = vmatprep.mubr.bf16.mxu0 %v1177
    %1595 = vmatmul.mubr.bf16.gmra.mxu0 %v859
    %v1596 = vpop.f32.mrf.mxu0
    %v1597 = vadd.f32 0.0, %v1596
    %v1598 = vpop.f32.mrf.mxu0
    %v1599 = vpop.f32.mrf.mxu0
    %v1600 = vadd.f32 0.0, %v1599
    %v1601 = vpop.f32.mrf.mxu0
    %1602 = vmatprep.mubr.bf16.mxu0 %v1180
    %1603 = vmatmul.mubr.bf16.gmra.mxu0 %v860
    %v1604 = vpop.f32.mrf.mxu0
    %v1605 = vadd.f32 0.0, %v1604
    %v1606 = vpop.f32.mrf.mxu0
    %v1607 = vpop.f32.mrf.mxu0
    %v1608 = vadd.f32 0.0, %v1607
    %v1609 = vpop.f32.mrf.mxu0
    %1610 = vmatprep.mubr.bf16.mxu0 %v1183
    %1611 = vmatmul.mubr.bf16.gmra.mxu0 %v861
    %v1612 = vpop.f32.mrf.mxu0
    %v1613 = vadd.f32 0.0, %v1612
    %v1614 = vpop.f32.mrf.mxu0
    %v1615 = vpop.f32.mrf.mxu0
    %v1616 = vadd.f32 0.0, %v1615
    %v1617 = vpop.f32.mrf.mxu0
    %1618 = vmatprep.mubr.bf16.mxu0 %v1186
    %1619 = vmatmul.mubr.bf16.gmra.mxu0 %v862
    %v1620 = vpop.f32.mrf.mxu0
    %v1621 = vadd.f32 0.0, %v1620
    %v1622 = vpop.f32.mrf.mxu0
    %v1623 = vpop.f32.mrf.mxu0
    %v1624 = vadd.f32 0.0, %v1623
    %v1625 = vpop.f32.mrf.mxu0
    %1626 = vmatprep.mubr.bf16.mxu0 %v1189
    %1627 = vmatmul.mubr.bf16.gmra.mxu0 %v863
    %v1628 = vpop.f32.mrf.mxu0
    %v1629 = vadd.f32 0.0, %v1628
    %v1630 = vpop.f32.mrf.mxu0
    %v1631 = vpop.f32.mrf.mxu0
    %v1632 = vadd.f32 0.0, %v1631
    %v1633 = vpop.f32.mrf.mxu0
    %1634 = vmatprep.mubr.bf16.mxu0 %v1192
    %1635 = vmatmul.mubr.bf16.gmra.mxu0 %v864
    %v1636 = vpop.f32.mrf.mxu0
    %v1637 = vadd.f32 0.0, %v1636
    %v1638 = vpop.f32.mrf.mxu0
    %v1639 = vpop.f32.mrf.mxu0
    %v1640 = vadd.f32 0.0, %v1639
    %v1641 = vpop.f32.mrf.mxu0
    %1642 = vmatprep.mubr.bf16.mxu0 %v1195
    %1643 = vmatmul.mubr.bf16.gmra.mxu0 %v873
    %v1644 = vpop.f32.mrf.mxu0
    %v1645 = vadd.f32 0.0, %v1644
    %v1646 = vpop.f32.mrf.mxu0
    %v1647 = vpop.f32.mrf.mxu0
    %v1648 = vadd.f32 0.0, %v1647
    %v1649 = vpop.f32.mrf.mxu0
    %1650 = vmatprep.mubr.bf16.mxu0 %v1198
    %1651 = vmatmul.mubr.bf16.gmra.mxu0 %v874
    %v1652 = vpop.f32.mrf.mxu0
    %v1653 = vadd.f32 0.0, %v1652
    %v1654 = vpop.f32.mrf.mxu0
    %v1655 = vpop.f32.mrf.mxu0
    %v1656 = vadd.f32 0.0, %v1655
    %v1657 = vpop.f32.mrf.mxu0
    %1658 = vmatprep.mubr.bf16.mxu0 %v1201
    %1659 = vmatmul.mubr.bf16.gmra.mxu0 %v875
    %v1660 = vpop.f32.mrf.mxu0
    %v1661 = vadd.f32 0.0, %v1660
    %v1662 = vpop.f32.mrf.mxu0
    %v1663 = vpop.f32.mrf.mxu0
    %v1664 = vadd.f32 0.0, %v1663
    %v1665 = vpop.f32.mrf.mxu0
    %1666 = vmatprep.mubr.bf16.mxu0 %v1204
    %1667 = vmatmul.mubr.bf16.gmra.mxu0 %v876
    %v1668 = vpop.f32.mrf.mxu0
    %v1669 = vadd.f32 0.0, %v1668
    %v1670 = vpop.f32.mrf.mxu0
    %v1671 = vpop.f32.mrf.mxu0
    %v1672 = vadd.f32 0.0, %v1671
    %v1673 = vpop.f32.mrf.mxu0
    %1674 = vmatprep.mubr.bf16.mxu0 %v1207
    %1675 = vmatmul.mubr.bf16.gmra.mxu0 %v877
    %v1676 = vpop.f32.mrf.mxu0
    %v1677 = vadd.f32 0.0, %v1676
    %v1678 = vpop.f32.mrf.mxu0
    %v1679 = vpop.f32.mrf.mxu0
    %v1680 = vadd.f32 0.0, %v1679
    %v1681 = vpop.f32.mrf.mxu0
    %1682 = vmatprep.mubr.bf16.mxu0 %v1210
    %1683 = vmatmul.mubr.bf16.gmra.mxu0 %v878
    %v1684 = vpop.f32.mrf.mxu0
    %v1685 = vadd.f32 0.0, %v1684
    %v1686 = vpop.f32.mrf.mxu0
    %v1687 = vpop.f32.mrf.mxu0
    %v1688 = vadd.f32 0.0, %v1687
    %v1689 = vpop.f32.mrf.mxu0
    %1690 = vmatprep.mubr.bf16.mxu0 %v1213
    %1691 = vmatmul.mubr.bf16.gmra.mxu0 %v879
    %v1692 = vpop.f32.mrf.mxu0
    %v1693 = vadd.f32 0.0, %v1692
    %v1694 = vpop.f32.mrf.mxu0
    %v1695 = vpop.f32.mrf.mxu0
    %v1696 = vadd.f32 0.0, %v1695
    %v1697 = vpop.f32.mrf.mxu0
    %1698 = vmatprep.mubr.bf16.mxu0 %v1216
    %1699 = vmatmul.mubr.bf16.gmra.mxu0 %v880
    %v1700 = vpop.f32.mrf.mxu0
    %v1701 = vadd.f32 0.0, %v1700
    %v1702 = vpop.f32.mrf.mxu0
    %v1703 = vpop.f32.mrf.mxu0
    %v1704 = vadd.f32 0.0, %v1703
    %v1705 = vpop.f32.mrf.mxu0
    %1706 = vmatprep.mubr.bf16.mxu0 %v1219
    %1707 = vmatmul.mubr.bf16.gmra.mxu0 %v889
    %v1708 = vpop.f32.mrf.mxu0
    %v1709 = vadd.f32 0.0, %v1708
    %v1710 = vpop.f32.mrf.mxu0
    %v1711 = vpop.f32.mrf.mxu0
    %v1712 = vadd.f32 0.0, %v1711
    %v1713 = vpop.f32.mrf.mxu0
    %1714 = vmatprep.mubr.bf16.mxu0 %v1222
    %1715 = vmatmul.mubr.bf16.gmra.mxu0 %v890
    %v1716 = vpop.f32.mrf.mxu0
    %v1717 = vadd.f32 0.0, %v1716
    %v1718 = vpop.f32.mrf.mxu0
    %v1719 = vpop.f32.mrf.mxu0
    %v1720 = vadd.f32 0.0, %v1719
    %v1721 = vpop.f32.mrf.mxu0
    %1722 = vmatprep.mubr.bf16.mxu0 %v1225
    %1723 = vmatmul.mubr.bf16.gmra.mxu0 %v891
    %v1724 = vpop.f32.mrf.mxu0
    %v1725 = vadd.f32 0.0, %v1724
    %v1726 = vpop.f32.mrf.mxu0
    %v1727 = vpop.f32.mrf.mxu0
    %v1728 = vadd.f32 0.0, %v1727
    %v1729 = vpop.f32.mrf.mxu0
    %1730 = vmatprep.mubr.bf16.mxu0 %v1228
    %1731 = vmatmul.mubr.bf16.gmra.mxu0 %v892
    %v1732 = vpop.f32.mrf.mxu0
    %v1733 = vadd.f32 0.0, %v1732
    %v1734 = vpop.f32.mrf.mxu0
    %v1735 = vpop.f32.mrf.mxu0
    %v1736 = vadd.f32 0.0, %v1735
    %v1737 = vpop.f32.mrf.mxu0
    %1738 = vmatprep.mubr.bf16.mxu0 %v1231
    %1739 = vmatmul.mubr.bf16.gmra.mxu0 %v893
    %v1740 = vpop.f32.mrf.mxu0
    %v1741 = vadd.f32 0.0, %v1740
    %v1742 = vpop.f32.mrf.mxu0
    %v1743 = vpop.f32.mrf.mxu0
    %v1744 = vadd.f32 0.0, %v1743
    %v1745 = vpop.f32.mrf.mxu0
    %1746 = vmatprep.mubr.bf16.mxu0 %v1234
    %1747 = vmatmul.mubr.bf16.gmra.mxu0 %v894
    %v1748 = vpop.f32.mrf.mxu0
    %v1749 = vadd.f32 0.0, %v1748
    %v1750 = vpop.f32.mrf.mxu0
    %v1751 = vpop.f32.mrf.mxu0
    %v1752 = vadd.f32 0.0, %v1751
    %v1753 = vpop.f32.mrf.mxu0
    %1754 = vmatprep.mubr.bf16.mxu0 %v1237
    %1755 = vmatmul.mubr.bf16.gmra.mxu0 %v895
    %v1756 = vpop.f32.mrf.mxu0
    %v1757 = vadd.f32 0.0, %v1756
    %v1758 = vpop.f32.mrf.mxu0
    %v1759 = vpop.f32.mrf.mxu0
    %v1760 = vadd.f32 0.0, %v1759
    %v1761 = vpop.f32.mrf.mxu0
    %1762 = vmatprep.mubr.bf16.mxu0 %v1240
    %1763 = vmatmul.mubr.bf16.gmra.mxu0 %v896
    %v1764 = vpop.f32.mrf.mxu0
    %v1765 = vadd.f32 0.0, %v1764
    %v1766 = vpop.f32.mrf.mxu0
    %v1767 = vpop.f32.mrf.mxu0
    %v1768 = vadd.f32 0.0, %v1767
    %v1769 = vpop.f32.mrf.mxu0
    %1770 = vmatprep.mubr.bf16.mxu0 %v1243
    %1771 = vmatmul.mubr.bf16.gmra.mxu0 %v905
    %v1772 = vpop.f32.mrf.mxu0
    %v1773 = vadd.f32 0.0, %v1772
    %v1774 = vpop.f32.mrf.mxu0
    %v1775 = vpop.f32.mrf.mxu0
    %v1776 = vadd.f32 0.0, %v1775
    %v1777 = vpop.f32.mrf.mxu0
    %1778 = vmatprep.mubr.bf16.mxu0 %v1246
    %1779 = vmatmul.mubr.bf16.gmra.mxu0 %v906
    %v1780 = vpop.f32.mrf.mxu0
    %v1781 = vadd.f32 0.0, %v1780
    %v1782 = vpop.f32.mrf.mxu0
    %v1783 = vpop.f32.mrf.mxu0
    %v1784 = vadd.f32 0.0, %v1783
    %v1785 = vpop.f32.mrf.mxu0
    %1786 = vmatprep.mubr.bf16.mxu0 %v1249
    %1787 = vmatmul.mubr.bf16.gmra.mxu0 %v907
    %v1788 = vpop.f32.mrf.mxu0
    %v1789 = vadd.f32 0.0, %v1788
    %v1790 = vpop.f32.mrf.mxu0
    %v1791 = vpop.f32.mrf.mxu0
    %v1792 = vadd.f32 0.0, %v1791
    %v1793 = vpop.f32.mrf.mxu0
    %1794 = vmatprep.mubr.bf16.mxu0 %v1252
    %1795 = vmatmul.mubr.bf16.gmra.mxu0 %v908
    %v1796 = vpop.f32.mrf.mxu0
    %v1797 = vadd.f32 0.0, %v1796
    %v1798 = vpop.f32.mrf.mxu0
    %v1799 = vpop.f32.mrf.mxu0
    %v1800 = vadd.f32 0.0, %v1799
    %v1801 = vpop.f32.mrf.mxu0
    %1802 = vmatprep.mubr.bf16.mxu0 %v1255
    %1803 = vmatmul.mubr.bf16.gmra.mxu0 %v909
    %v1804 = vpop.f32.mrf.mxu0
    %v1805 = vadd.f32 0.0, %v1804
    %v1806 = vpop.f32.mrf.mxu0
    %v1807 = vpop.f32.mrf.mxu0
    %v1808 = vadd.f32 0.0, %v1807
    %v1809 = vpop.f32.mrf.mxu0
    %1810 = vmatprep.mubr.bf16.mxu0 %v1258
    %1811 = vmatmul.mubr.bf16.gmra.mxu0 %v910
    %v1812 = vpop.f32.mrf.mxu0
    %v1813 = vadd.f32 0.0, %v1812
    %v1814 = vpop.f32.mrf.mxu0
    %v1815 = vpop.f32.mrf.mxu0
    %v1816 = vadd.f32 0.0, %v1815
    %v1817 = vpop.f32.mrf.mxu0
    %1818 = vmatprep.mubr.bf16.mxu0 %v1261
    %1819 = vmatmul.mubr.bf16.gmra.mxu0 %v911
    %v1820 = vpop.f32.mrf.mxu0
    %v1821 = vadd.f32 0.0, %v1820
    %v1822 = vpop.f32.mrf.mxu0
    %v1823 = vpop.f32.mrf.mxu0
    %v1824 = vadd.f32 0.0, %v1823
    %v1825 = vpop.f32.mrf.mxu0
    %1826 = vmatprep.mubr.bf16.mxu0 %v1264
    %1827 = vmatmul.mubr.bf16.gmra.mxu0 %v912
    %v1828 = vpop.f32.mrf.mxu0
    %v1829 = vadd.f32 0.0, %v1828
    %v1830 = vpop.f32.mrf.mxu0
    %v1831 = vpop.f32.mrf.mxu0
    %v1832 = vadd.f32 0.0, %v1831
    %v1833 = vpop.f32.mrf.mxu0
    %1834 = vmatprep.mubr.bf16.mxu0 %v1267
    %1835 = vmatmul.mubr.bf16.gmra.mxu0 %v921
    %v1836 = vpop.f32.mrf.mxu0
    %v1837 = vadd.f32 0.0, %v1836
    %v1838 = vpop.f32.mrf.mxu0
    %v1839 = vpop.f32.mrf.mxu0
    %v1840 = vadd.f32 0.0, %v1839
    %v1841 = vpop.f32.mrf.mxu0
    %1842 = vmatprep.mubr.bf16.mxu0 %v1270
    %1843 = vmatmul.mubr.bf16.gmra.mxu0 %v922
    %v1844 = vpop.f32.mrf.mxu0
    %v1845 = vadd.f32 0.0, %v1844
    %v1846 = vpop.f32.mrf.mxu0
    %v1847 = vpop.f32.mrf.mxu0
    %v1848 = vadd.f32 0.0, %v1847
    %v1849 = vpop.f32.mrf.mxu0
    %1850 = vmatprep.mubr.bf16.mxu0 %v1273
    %1851 = vmatmul.mubr.bf16.gmra.mxu0 %v923
    %v1852 = vpop.f32.mrf.mxu0
    %v1853 = vadd.f32 0.0, %v1852
    %v1854 = vpop.f32.mrf.mxu0
    %v1855 = vpop.f32.mrf.mxu0
    %v1856 = vadd.f32 0.0, %v1855
    %v1857 = vpop.f32.mrf.mxu0
    %1858 = vmatprep.mubr.bf16.mxu0 %v1276
    %1859 = vmatmul.mubr.bf16.gmra.mxu0 %v924
    %v1860 = vpop.f32.mrf.mxu0
    %v1861 = vadd.f32 0.0, %v1860
    %v1862 = vpop.f32.mrf.mxu0
    %v1863 = vpop.f32.mrf.mxu0
    %v1864 = vadd.f32 0.0, %v1863
    %v1865 = vpop.f32.mrf.mxu0
    %1866 = vmatprep.mubr.bf16.mxu0 %v1279
    %1867 = vmatmul.mubr.bf16.gmra.mxu0 %v925
    %v1868 = vpop.f32.mrf.mxu0
    %v1869 = vadd.f32 0.0, %v1868
    %v1870 = vpop.f32.mrf.mxu0
    %v1871 = vpop.f32.mrf.mxu0
    %v1872 = vadd.f32 0.0, %v1871
    %v1873 = vpop.f32.mrf.mxu0
    %1874 = vmatprep.mubr.bf16.mxu0 %v1282
    %1875 = vmatmul.mubr.bf16.gmra.mxu0 %v926
    %v1876 = vpop.f32.mrf.mxu0
    %v1877 = vadd.f32 0.0, %v1876
    %v1878 = vpop.f32.mrf.mxu0
    %v1879 = vpop.f32.mrf.mxu0
    %v1880 = vadd.f32 0.0, %v1879
    %v1881 = vpop.f32.mrf.mxu0
    %1882 = vmatprep.mubr.bf16.mxu0 %v1285
    %1883 = vmatmul.mubr.bf16.gmra.mxu0 %v927
    %v1884 = vpop.f32.mrf.mxu0
    %v1885 = vadd.f32 0.0, %v1884
    %v1886 = vpop.f32.mrf.mxu0
    %v1887 = vpop.f32.mrf.mxu0
    %v1888 = vadd.f32 0.0, %v1887
    %v1889 = vpop.f32.mrf.mxu0
    %1890 = vmatprep.mubr.bf16.mxu0 %v1288
    %1891 = vmatmul.mubr.bf16.gmra.mxu0 %v928
    %v1892 = vpop.f32.mrf.mxu0
    %v1893 = vadd.f32 0.0, %v1892
    %v1894 = vpop.f32.mrf.mxu0
    %v1895 = vpop.f32.mrf.mxu0
    %v1896 = vadd.f32 0.0, %v1895
    %v1897 = vpop.f32.mrf.mxu0
    %1898 = vdwg.mxu0
    %vm1899 = vcmask 400384
    %1900 = vst.msk [vmem:[%s3] sm:$0xff] %vm1899, %v1325
    %1901 = vst.msk [vmem:[%s3 + $0x8] sm:$0xff] %vm1899, %v1328
    %1902 = vst.msk [vmem:[%s3 + $0x10] sm:$0xff] %vm1899, %v1333
    %1903 = vst.msk [vmem:[%s3 + $0x18] sm:$0xff] %vm1899, %v1336
    %1904 = vst.msk [vmem:[%s3 + $0x20] sm:$0xff] %vm1899, %v1341
    %1905 = vst.msk [vmem:[%s3 + $0x28] sm:$0xff] %vm1899, %v1344
    %1906 = vst.msk [vmem:[%s3 + $0x30] sm:$0xff] %vm1899, %v1349
    %1907 = vst.msk [vmem:[%s3 + $0x38] sm:$0xff] %vm1899, %v1352
    %1908 = vst.msk [vmem:[%s3 + $0x40] sm:$0xff] %vm1899, %v1357
    %1909 = vst.msk [vmem:[%s3 + $0x48] sm:$0xff] %vm1899, %v1360
    %1910 = vst.msk [vmem:[%s3 + $0x50] sm:$0xff] %vm1899, %v1365
    %1911 = vst.msk [vmem:[%s3 + $0x58] sm:$0xff] %vm1899, %v1368
    %1912 = vst.msk [vmem:[%s3 + $0x60] sm:$0xff] %vm1899, %v1373
    %1913 = vst.msk [vmem:[%s3 + $0x68] sm:$0xff] %vm1899, %v1376
    %1914 = vst.msk [vmem:[%s3 + $0x70] sm:$0xff] %vm1899, %v1381
    %1915 = vst.msk [vmem:[%s3 + $0x78] sm:$0xff] %vm1899, %v1384
    %1916 = vst.msk [vmem:[%s3 + $0x80] sm:$0xff] %vm1899, %v1389
    %1917 = vst.msk [vmem:[%s3 + $0x88] sm:$0xff] %vm1899, %v1392
    %1918 = vst.msk [vmem:[%s3 + $0x90] sm:$0xff] %vm1899, %v1397
    %1919 = vst.msk [vmem:[%s3 + $0x98] sm:$0xff] %vm1899, %v1400
    %1920 = vst.msk [vmem:[%s3 + $0xa0] sm:$0xff] %vm1899, %v1405
    %1921 = vst.msk [vmem:[%s3 + $0xa8] sm:$0xff] %vm1899, %v1408
    %1922 = vst.msk [vmem:[%s3 + $0xb0] sm:$0xff] %vm1899, %v1413
    %1923 = vst.msk [vmem:[%s3 + $0xb8] sm:$0xff] %vm1899, %v1416
    %1924 = vst.msk [vmem:[%s3 + $0xc0] sm:$0xff] %vm1899, %v1421
    %1925 = vst.msk [vmem:[%s3 + $0xc8] sm:$0xff] %vm1899, %v1424
    %1926 = vst.msk [vmem:[%s3 + $0xd0] sm:$0xff] %vm1899, %v1429
    %1927 = vst.msk [vmem:[%s3 + $0xd8] sm:$0xff] %vm1899, %v1432
    %1928 = vst.msk [vmem:[%s3 + $0xe0] sm:$0xff] %vm1899, %v1437
    %1929 = vst.msk [vmem:[%s3 + $0xe8] sm:$0xff] %vm1899, %v1440
    %1930 = vst.msk [vmem:[%s3 + $0xf0] sm:$0xff] %vm1899, %v1445
    %1931 = vst.msk [vmem:[%s3 + $0xf8] sm:$0xff] %vm1899, %v1448
    %1932 = vst.msk [vmem:[%s3 + $0x100] sm:$0xff] %vm1899, %v1453
    %1933 = vst.msk [vmem:[%s3 + $0x108] sm:$0xff] %vm1899, %v1456
    %1934 = vst.msk [vmem:[%s3 + $0x110] sm:$0xff] %vm1899, %v1461
    %1935 = vst.msk [vmem:[%s3 + $0x118] sm:$0xff] %vm1899, %v1464
    %1936 = vst.msk [vmem:[%s3 + $0x120] sm:$0xff] %vm1899, %v1469
    %1937 = vst.msk [vmem:[%s3 + $0x128] sm:$0xff] %vm1899, %v1472
    %1938 = vst.msk [vmem:[%s3 + $0x130] sm:$0xff] %vm1899, %v1477
    %1939 = vst.msk [vmem:[%s3 + $0x138] sm:$0xff] %vm1899, %v1480
    %1940 = vst.msk [vmem:[%s3 + $0x140] sm:$0xff] %vm1899, %v1485
    %1941 = vst.msk [vmem:[%s3 + $0x148] sm:$0xff] %vm1899, %v1488
    %1942 = vst.msk [vmem:[%s3 + $0x150] sm:$0xff] %vm1899, %v1493
    %1943 = vst.msk [vmem:[%s3 + $0x158] sm:$0xff] %vm1899, %v1496
    %1944 = vst.msk [vmem:[%s3 + $0x160] sm:$0xff] %vm1899, %v1501
    %1945 = vst.msk [vmem:[%s3 + $0x168] sm:$0xff] %vm1899, %v1504
    %1946 = vst.msk [vmem:[%s3 + $0x170] sm:$0xff] %vm1899, %v1509
    %1947 = vst.msk [vmem:[%s3 + $0x178] sm:$0xff] %vm1899, %v1512
    %1948 = vst.msk [vmem:[%s3 + $0x180] sm:$0xff] %vm1899, %v1517
    %1949 = vst.msk [vmem:[%s3 + $0x188] sm:$0xff] %vm1899, %v1520
    %1950 = vst.msk [vmem:[%s3 + $0x190] sm:$0xff] %vm1899, %v1525
    %1951 = vst.msk [vmem:[%s3 + $0x198] sm:$0xff] %vm1899, %v1528
    %1952 = vst.msk [vmem:[%s3 + $0x1a0] sm:$0xff] %vm1899, %v1533
    %1953 = vst.msk [vmem:[%s3 + $0x1a8] sm:$0xff] %vm1899, %v1536
    %1954 = vst.msk [vmem:[%s3 + $0x1b0] sm:$0xff] %vm1899, %v1541
    %1955 = vst.msk [vmem:[%s3 + $0x1b8] sm:$0xff] %vm1899, %v1544
    %1956 = vst.msk [vmem:[%s3 + $0x1c0] sm:$0xff] %vm1899, %v1549
    %1957 = vst.msk [vmem:[%s3 + $0x1c8] sm:$0xff] %vm1899, %v1552
    %1958 = vst.msk [vmem:[%s3 + $0x1d0] sm:$0xff] %vm1899, %v1557
    %1959 = vst.msk [vmem:[%s3 + $0x1d8] sm:$0xff] %vm1899, %v1560
    %1960 = vst.msk [vmem:[%s3 + $0x1e0] sm:$0xff] %vm1899, %v1565
    %1961 = vst.msk [vmem:[%s3 + $0x1e8] sm:$0xff] %vm1899, %v1568
    %1962 = vst.msk [vmem:[%s3 + $0x1f0] sm:$0xff] %vm1899, %v1573
    %1963 = vst.msk [vmem:[%s3 + $0x1f8] sm:$0xff] %vm1899, %v1576
    %1964 = vst.msk [vmem:[%s3 + $0x200] sm:$0xff] %vm1899, %v1581
    %1965 = vst.msk [vmem:[%s3 + $0x208] sm:$0xff] %vm1899, %v1584
    %1966 = vst.msk [vmem:[%s3 + $0x210] sm:$0xff] %vm1899, %v1589
    %1967 = vst.msk [vmem:[%s3 + $0x218] sm:$0xff] %vm1899, %v1592
    %1968 = vst.msk [vmem:[%s3 + $0x220] sm:$0xff] %vm1899, %v1597
    %1969 = vst.msk [vmem:[%s3 + $0x228] sm:$0xff] %vm1899, %v1600
    %1970 = vst.msk [vmem:[%s3 + $0x230] sm:$0xff] %vm1899, %v1605
    %1971 = vst.msk [vmem:[%s3 + $0x238] sm:$0xff] %vm1899, %v1608
    %1972 = vst.msk [vmem:[%s3 + $0x240] sm:$0xff] %vm1899, %v1613
    %1973 = vst.msk [vmem:[%s3 + $0x248] sm:$0xff] %vm1899, %v1616
    %1974 = vst.msk [vmem:[%s3 + $0x250] sm:$0xff] %vm1899, %v1621
    %1975 = vst.msk [vmem:[%s3 + $0x258] sm:$0xff] %vm1899, %v1624
    %1976 = vst.msk [vmem:[%s3 + $0x260] sm:$0xff] %vm1899, %v1629
    %1977 = vst.msk [vmem:[%s3 + $0x268] sm:$0xff] %vm1899, %v1632
    %1978 = vst.msk [vmem:[%s3 + $0x270] sm:$0xff] %vm1899, %v1637
    %1979 = vst.msk [vmem:[%s3 + $0x278] sm:$0xff] %vm1899, %v1640
    %1980 = vst.msk [vmem:[%s3 + $0x280] sm:$0xff] %vm1899, %v1645
    %1981 = vst.msk [vmem:[%s3 + $0x288] sm:$0xff] %vm1899, %v1648
    %1982 = vst.msk [vmem:[%s3 + $0x290] sm:$0xff] %vm1899, %v1653
    %1983 = vst.msk [vmem:[%s3 + $0x298] sm:$0xff] %vm1899, %v1656
    %1984 = vst.msk [vmem:[%s3 + $0x2a0] sm:$0xff] %vm1899, %v1661
    %1985 = vst.msk [vmem:[%s3 + $0x2a8] sm:$0xff] %vm1899, %v1664
    %1986 = vst.msk [vmem:[%s3 + $0x2b0] sm:$0xff] %vm1899, %v1669
    %1987 = vst.msk [vmem:[%s3 + $0x2b8] sm:$0xff] %vm1899, %v1672
    %1988 = vst.msk [vmem:[%s3 + $0x2c0] sm:$0xff] %vm1899, %v1677
    %1989 = vst.msk [vmem:[%s3 + $0x2c8] sm:$0xff] %vm1899, %v1680
    %1990 = vst.msk [vmem:[%s3 + $0x2d0] sm:$0xff] %vm1899, %v1685
    %1991 = vst.msk [vmem:[%s3 + $0x2d8] sm:$0xff] %vm1899, %v1688
    %1992 = vst.msk [vmem:[%s3 + $0x2e0] sm:$0xff] %vm1899, %v1693
    %1993 = vst.msk [vmem:[%s3 + $0x2e8] sm:$0xff] %vm1899, %v1696
    %1994 = vst.msk [vmem:[%s3 + $0x2f0] sm:$0xff] %vm1899, %v1701
    %1995 = vst.msk [vmem:[%s3 + $0x2f8] sm:$0xff] %vm1899, %v1704
    %1996 = vst.msk [vmem:[%s3 + $0x300] sm:$0xff] %vm1899, %v1709
    %1997 = vst.msk [vmem:[%s3 + $0x308] sm:$0xff] %vm1899, %v1712
    %1998 = vst.msk [vmem:[%s3 + $0x310] sm:$0xff] %vm1899, %v1717
    %1999 = vst.msk [vmem:[%s3 + $0x318] sm:$0xff] %vm1899, %v1720
    %2000 = vst.msk [vmem:[%s3 + $0x320] sm:$0xff] %vm1899, %v1725
    %2001 = vst.msk [vmem:[%s3 + $0x328] sm:$0xff] %vm1899, %v1728
    %2002 = vst.msk [vmem:[%s3 + $0x330] sm:$0xff] %vm1899, %v1733
    %2003 = vst.msk [vmem:[%s3 + $0x338] sm:$0xff] %vm1899, %v1736
    %2004 = vst.msk [vmem:[%s3 + $0x340] sm:$0xff] %vm1899, %v1741
    %2005 = vst.msk [vmem:[%s3 + $0x348] sm:$0xff] %vm1899, %v1744
    %2006 = vst.msk [vmem:[%s3 + $0x350] sm:$0xff] %vm1899, %v1749
    %2007 = vst.msk [vmem:[%s3 + $0x358] sm:$0xff] %vm1899, %v1752
    %2008 = vst.msk [vmem:[%s3 + $0x360] sm:$0xff] %vm1899, %v1757
    %2009 = vst.msk [vmem:[%s3 + $0x368] sm:$0xff] %vm1899, %v1760
    %2010 = vst.msk [vmem:[%s3 + $0x370] sm:$0xff] %vm1899, %v1765
    %2011 = vst.msk [vmem:[%s3 + $0x378] sm:$0xff] %vm1899, %v1768
    %2012 = vst.msk [vmem:[%s3 + $0x380] sm:$0xff] %vm1899, %v1773
    %2013 = vst.msk [vmem:[%s3 + $0x388] sm:$0xff] %vm1899, %v1776
    %2014 = vst.msk [vmem:[%s3 + $0x390] sm:$0xff] %vm1899, %v1781
    %2015 = vst.msk [vmem:[%s3 + $0x398] sm:$0xff] %vm1899, %v1784
    %2016 = vst.msk [vmem:[%s3 + $0x3a0] sm:$0xff] %vm1899, %v1789
    %2017 = vst.msk [vmem:[%s3 + $0x3a8] sm:$0xff] %vm1899, %v1792
    %2018 = vst.msk [vmem:[%s3 + $0x3b0] sm:$0xff] %vm1899, %v1797
    %2019 = vst.msk [vmem:[%s3 + $0x3b8] sm:$0xff] %vm1899, %v1800
    %2020 = vst.msk [vmem:[%s3 + $0x3c0] sm:$0xff] %vm1899, %v1805
    %2021 = vst.msk [vmem:[%s3 + $0x3c8] sm:$0xff] %vm1899, %v1808
    %2022 = vst.msk [vmem:[%s3 + $0x3d0] sm:$0xff] %vm1899, %v1813
    %2023 = vst.msk [vmem:[%s3 + $0x3d8] sm:$0xff] %vm1899, %v1816
    %2024 = vst.msk [vmem:[%s3 + $0x3e0] sm:$0xff] %vm1899, %v1821
    %2025 = vst.msk [vmem:[%s3 + $0x3e8] sm:$0xff] %vm1899, %v1824
    %2026 = vst.msk [vmem:[%s3 + $0x3f0] sm:$0xff] %vm1899, %v1829
    %2027 = vst.msk [vmem:[%s3 + $0x3f8] sm:$0xff] %vm1899, %v1832
    %2028 = vst.msk [vmem:[%s3 + $0x400] sm:$0xff] %vm1899, %v1837
    %2029 = vst.msk [vmem:[%s3 + $0x408] sm:$0xff] %vm1899, %v1840
    %2030 = vst.msk [vmem:[%s3 + $0x410] sm:$0xff] %vm1899, %v1845
    %2031 = vst.msk [vmem:[%s3 + $0x418] sm:$0xff] %vm1899, %v1848
    %2032 = vst.msk [vmem:[%s3 + $0x420] sm:$0xff] %vm1899, %v1853
    %2033 = vst.msk [vmem:[%s3 + $0x428] sm:$0xff] %vm1899, %v1856
    %2034 = vst.msk [vmem:[%s3 + $0x430] sm:$0xff] %vm1899, %v1861
    %2035 = vst.msk [vmem:[%s3 + $0x438] sm:$0xff] %vm1899, %v1864
    %2036 = vst.msk [vmem:[%s3 + $0x440] sm:$0xff] %vm1899, %v1869
    %2037 = vst.msk [vmem:[%s3 + $0x448] sm:$0xff] %vm1899, %v1872
    %2038 = vst.msk [vmem:[%s3 + $0x450] sm:$0xff] %vm1899, %v1877
    %2039 = vst.msk [vmem:[%s3 + $0x458] sm:$0xff] %vm1899, %v1880
    %2040 = vst.msk [vmem:[%s3 + $0x460] sm:$0xff] %vm1899, %v1885
    %2041 = vst.msk [vmem:[%s3 + $0x468] sm:$0xff] %vm1899, %v1888
    %2042 = vst.msk [vmem:[%s3 + $0x470] sm:$0xff] %vm1899, %v1893
    %2043 = vst.msk [vmem:[%s3 + $0x478] sm:$0xff] %vm1899, %v1896
    // Predicated region
    $region18: #{tpu_custom_call.1} parent=1 // pred_check
      _
    $region19: #{tpu_custom_call.1} parent=1 // pred_check_branch
      %2045 = sbr.rel (0) target = $region21
    $region20: #{tpu_custom_call.1} parent=1 // pred_region
      _
    $region21: #{tpu_custom_call.1} parent=1 // pred_fallthru
      _
    // Predicated region
    $region22: #{tpu_custom_call.1} parent=1 // pred_check
      _
    $region23: #{tpu_custom_call.1} parent=1 // pred_check_branch
      %2047 = sbr.rel (0) target = $region25
    $region24: #{tpu_custom_call.1} parent=1 // pred_region
      _
    $region25: #{tpu_custom_call.1} parent=1 // pred_fallthru
      _
    %2048 = vsyncpa [#allocation3], 1

</llo_original>
